<compile_context>
chip_gen: v7x
topology: tpu7x:2x2x1
jax: 0.10.0
libtpu: 0.0.40
codegen_flags: <defaults>
</compile_context>

<pallas_src>
import jax
import jax.numpy as jnp
from jax.experimental import pallas as pl
from jax.experimental.pallas import tpu as pltpu

HIDDEN = 64
INPUT = 28
SEQ = 28
NCLASS = 10


def _round_up(x, m):
    return ((x + m - 1) // m) * m


# ----------------------------------------------------------------------------
# Kernel 1: input projection (fully parallel) -> pre_gates = x @ W_ih^T + bias
# ----------------------------------------------------------------------------
def input_proj_kernel(x_ref, wih_ref, b_ref, pre_ref):
    # x_ref: (1, bb, F) bf16; wih_ref: (F, 4H) bf16; b_ref: (1, 4H) f32
    pre_ref[0] = (
        jnp.dot(x_ref[0], wih_ref[...], preferred_element_type=jnp.float32)
        + b_ref[...]
    )


# ----------------------------------------------------------------------------
# Kernel 2: LSTM recurrence over time + final Linear on the last hidden state
# ----------------------------------------------------------------------------
def lstm_recurrent_kernel(pre_ref, whh_ref, wout_ref, bout_ref, out_ref,
                          h_sc, c_sc):
    H = HIDDEN
    t = pl.program_id(1)

    @pl.when(t == 0)
    def _init():
        h_sc[...] = jnp.zeros_like(h_sc)
        c_sc[...] = jnp.zeros_like(c_sc)

    h = h_sc[...]
    c = c_sc[...]

    # Only the (bb, H) @ (H, 4H) recurrent matmul stays on the serial chain.
    gates = pre_ref[0] + jnp.dot(
        h.astype(jnp.bfloat16), whh_ref[...], preferred_element_type=jnp.float32
    )  # (bb, 4H), gate column order: [i | f | o | g]

    sig = jax.nn.sigmoid(gates[:, : 3 * H])      # one contiguous 3H-wide sigmoid
    i_g = sig[:, 0:H]
    f_g = sig[:, H:2 * H]
    o_g = sig[:, 2 * H:3 * H]
    g_g = jnp.tanh(gates[:, 3 * H:])             # one H-wide tanh

    c_new = f_g * c + i_g * g_g                  # f32 state math, kept in vregs
    h_new = o_g * jnp.tanh(c_new)
    c_sc[...] = c_new
    h_sc[...] = h_new

    @pl.when(t == pl.num_programs(1) - 1)
    def _finalize():
        out_ref[...] = (
            jnp.dot(h_new, wout_ref[...], preferred_element_type=jnp.float32)
            + bout_ref[...]
        )


# ----------------------------------------------------------------------------
# Wrapper
# ----------------------------------------------------------------------------
def rnn_net_forward(x, params, *, block_b=128):
    """x: (B, 1, 28, 28) float32 (NCHW). Returns (B, 10) float32."""
    w_ih, w_hh, b_ih, b_hh, w_out, b_out = params
    H = HIDDEN

    x3d = x.reshape(-1, SEQ, INPUT).astype(jnp.float32)   # (B, T, F)
    B = x3d.shape[0]

    # Reorder PyTorch gate blocks [i, f, g, o] -> [i, f, o, g] so sigmoid/tanh
    # each get one contiguous slice in the kernel.
    perm = jnp.concatenate(
        [jnp.arange(0, 2 * H), jnp.arange(3 * H, 4 * H), jnp.arange(2 * H, 3 * H)]
    )
    wih_t = jnp.transpose(w_ih[perm]).astype(jnp.bfloat16)   # (F, 4H)
    whh_t = jnp.transpose(w_hh[perm]).astype(jnp.bfloat16)   # (H, 4H)
    bias = (b_ih + b_hh)[perm].reshape(1, 4 * H).astype(jnp.float32)
    wout_t = jnp.transpose(w_out).astype(jnp.float32)        # (H, C)
    bout = b_out.reshape(1, NCLASS).astype(jnp.float32)

    # Time-major, batch padded to a multiple of the batch block.
    bb = min(block_b, _round_up(B, 8))
    Bp = _round_up(B, bb)
    nb = Bp // bb
    x_tbf = jnp.transpose(x3d, (1, 0, 2))                    # (T, B, F)
    if Bp != B:
        x_tbf = jnp.pad(x_tbf, ((0, 0), (0, Bp - B), (0, 0)))
    x_tbf = x_tbf.astype(jnp.bfloat16)

    # --- Kernel 1: pre-gates for all timesteps (parallel, pipelined) ---------
    pre_gates = pl.pallas_call(
        input_proj_kernel,
        out_shape=jax.ShapeDtypeStruct((SEQ, Bp, 4 * H), jnp.float32),
        grid_spec=pltpu.PrefetchScalarGridSpec(
            num_scalar_prefetch=0,
            grid=(nb, SEQ),
            in_specs=[
                pl.BlockSpec((1, bb, INPUT), lambda b, t: (t, b, 0)),
                pl.BlockSpec((INPUT, 4 * H), lambda b, t: (0, 0)),
                pl.BlockSpec((1, 4 * H), lambda b, t: (0, 0)),
            ],
            out_specs=pl.BlockSpec((1, bb, 4 * H), lambda b, t: (t, b, 0)),
        ),
        compiler_params=pltpu.CompilerParams(
            dimension_semantics=("parallel", "parallel")),
    )(x_tbf, wih_t, bias)

    # --- Kernel 2: streamed recurrence, batch "parallel", time "arbitrary" ---
    out_padded = pl.pallas_call(
        lstm_recurrent_kernel,
        out_shape=jax.ShapeDtypeStruct((Bp, NCLASS), jnp.float32),
        grid_spec=pltpu.PrefetchScalarGridSpec(
            num_scalar_prefetch=0,
            grid=(nb, SEQ),
            in_specs=[
                pl.BlockSpec((1, bb, 4 * H), lambda b, t: (t, b, 0)),  # pre-gates
                pl.BlockSpec((H, 4 * H), lambda b, t: (0, 0)),         # W_hh^T
                pl.BlockSpec((H, NCLASS), lambda b, t: (0, 0)),        # W_out^T
                pl.BlockSpec((1, NCLASS), lambda b, t: (0, 0)),        # b_out
            ],
            out_specs=pl.BlockSpec((bb, NCLASS), lambda b, t: (b, 0)),
            scratch_shapes=[
                pltpu.VMEM((bb, H), jnp.float32),   # h
                pltpu.VMEM((bb, H), jnp.float32),   # c
            ],
        ),
        compiler_params=pltpu.CompilerParams(
            dimension_semantics=("parallel", "arbitrary")),
    )(pre_gates, whh_t, wout_t, bout)

    return out_padded[:B]


# ----------------------------------------------------------------------------
# Params / reference
# ----------------------------------------------------------------------------
def init_params(key):
    """PyTorch-shaped params, uniform(-1/sqrt(H), 1/sqrt(H))."""
    k = 1.0 / jnp.sqrt(jnp.float32(HIDDEN))
    ks = jax.random.split(key, 6)
    w_ih = jax.random.uniform(ks[0], (4 * HIDDEN, INPUT), jnp.float32, -k, k)
    w_hh = jax.random.uniform(ks[1], (4 * HIDDEN, HIDDEN), jnp.float32, -k, k)
    b_ih = jax.random.uniform(ks[2], (4 * HIDDEN,), jnp.float32, -k, k)
    b_hh = jax.random.uniform(ks[3], (4 * HIDDEN,), jnp.float32, -k, k)
    w_out = jax.random.uniform(ks[4], (NCLASS, HIDDEN), jnp.float32, -k, k)
    b_out = jax.random.uniform(ks[5], (NCLASS,), jnp.float32, -k, k)
    return (w_ih, w_hh, b_ih, b_hh, w_out, b_out)


def rnn_net_reference(x, params):
    """Pure-JAX f32 reference of the PyTorch forward (original gate order)."""
    w_ih, w_hh, b_ih, b_hh, w_out, b_out = params
    x3d = x.reshape(-1, SEQ, INPUT)
    B = x3d.shape[0]
    h = jnp.zeros((B, HIDDEN), jnp.float32)
    c = jnp.zeros((B, HIDDEN), jnp.float32)
    for t in range(SEQ):
        gates = x3d[:, t, :] @ w_ih.T + h @ w_hh.T + b_ih + b_hh
        i_g = jax.nn.sigmoid(gates[:, 0 * HIDDEN:1 * HIDDEN])
        f_g = jax.nn.sigmoid(gates[:, 1 * HIDDEN:2 * HIDDEN])
        g_g = jnp.tanh(gates[:, 2 * HIDDEN:3 * HIDDEN])
        o_g = jax.nn.sigmoid(gates[:, 3 * HIDDEN:4 * HIDDEN])
        c = f_g * c + i_g * g_g
        h = o_g * jnp.tanh(c)
    return h @ w_out.T + b_out


if __name__ == "__main__":
    key = jax.random.PRNGKey(0)
    pkey, xkey = jax.random.split(key)
    params = init_params(pkey)

    # Small batch (initial states are zeros, so the hard-coded B=1000 in the
    # PyTorch module is numerically irrelevant).  256 = 2 batch blocks of 128.
    B = 256
    x = jax.random.normal(xkey, (B, 1, 28, 28), jnp.float32)

    fwd = jax.jit(rnn_net_forward)
    out = jax.block_until_ready(fwd(x, params))
    ref = jax.block_until_ready(rnn_net_reference(x, params))

    assert out.shape == (B, NCLASS) and out.dtype == jnp.float32
    # bf16 MXU operands (f32 accumulation + f32 h/c state) per the perf review;
    # tolerance relaxed from 1e-3 to 1e-2 to cover bf16 rounding over 28 steps.
    assert jnp.allclose(out, ref, atol=1e-2, rtol=1e-2), "mismatch vs reference"
    print("KERNEL_OK")
</pallas_src>

<mosaic_0001>
module attributes {stable_mosaic.version = 11 : i64} {
  func.func @input_proj_kernel(%arg0: i32, %arg1: i32, %arg2: memref<1x128x28xbf16, #tpu.memory_space<vmem>>, %arg3: memref<28x256xbf16, #tpu.memory_space<vmem>>, %arg4: memref<1x256xf32, #tpu.memory_space<vmem>>, %arg5: memref<1x128x256xf32, #tpu.memory_space<vmem>>) attributes {dimension_semantics = [#tpu.dimension_semantics<parallel>, #tpu.dimension_semantics<parallel>], iteration_bounds = array<i64: 2, 28>, scalar_prefetch = 0 : i64, scratch_operands = 0 : i64, tpu.core_type = #tpu.core_type<tc>, window_params = [{transform_indices = @transform_0, window_bounds = array<i64: 1, 128, 28>}, {pipeline_mode = #tpu.pipeline_mode<synchronous>, transform_indices = @transform_1, window_bounds = array<i64: 28, 256>}, {pipeline_mode = #tpu.pipeline_mode<synchronous>, transform_indices = @transform_2, window_bounds = array<i64: 1, 256>}, {transform_indices = @transform_3, window_bounds = array<i64: 1, 128, 256>}]} {
    %c0 = arith.constant 0 : index
    %c0_0 = arith.constant 0 : index
    %c0_1 = arith.constant 0 : index
    %0 = vector.load %arg2[%c0, %c0_0, %c0_1] : memref<1x128x28xbf16, #tpu.memory_space<vmem>>, vector<1x128x28xbf16>
    %1 = vector.shape_cast %0 : vector<1x128x28xbf16> to vector<128x28xbf16>
    %c0_2 = arith.constant 0 : index
    %c0_3 = arith.constant 0 : index
    %2 = vector.load %arg3[%c0_2, %c0_3] : memref<28x256xbf16, #tpu.memory_space<vmem>>, vector<28x256xbf16>
    %cst = arith.constant dense<0.000000e+00> : vector<128x256xf32>
    %3 = tpu.matmul %1, %2, %cst {dimension_numbers = #tpu.dot_dimension_numbers<[1], [0], [0], [1], [0, 0, 1, 1], [], []>} : vector<128x28xbf16>, vector<28x256xbf16>, vector<128x256xf32> -> vector<128x256xf32>
    %c0_4 = arith.constant 0 : index
    %c0_5 = arith.constant 0 : index
    %4 = vector.load %arg4[%c0_4, %c0_5] : memref<1x256xf32, #tpu.memory_space<vmem>>, vector<1x256xf32>
    %5 = vector.broadcast %4 : vector<1x256xf32> to vector<128x256xf32>
    %6 = arith.addf %3, %5 : vector<128x256xf32>
    %c0_6 = arith.constant 0 : index
    %c0_7 = arith.constant 0 : index
    %c0_8 = arith.constant 0 : index
    %7 = vector.load %arg5[%c0_6, %c0_7, %c0_8] : memref<1x128x256xf32, #tpu.memory_space<vmem>>, vector<1x128x256xf32>
    %8 = vector.shape_cast %7 : vector<1x128x256xf32> to vector<128x256xf32>
    %9 = vector.shape_cast %6 : vector<128x256xf32> to vector<1x128x256xf32>
    tpu.vector_store %arg5[%c0_6, %c0_7, %c0_8], %9 {strides = array<i32>} : memref<1x128x256xf32, #tpu.memory_space<vmem>>, vector<1x128x256xf32>,
    return
  }
  func.func @transform_0(%arg0: i32, %arg1: i32) -> (i32, i32, i32) {
    %c0_i32 = arith.constant 0 : i32
    %c0_i32_0 = arith.constant 0 : i32
    return %arg1, %arg0, %c0_i32 : i32, i32, i32
  }
  func.func @transform_1(%arg0: i32, %arg1: i32) -> (i32, i32) {
    %c0_i32 = arith.constant 0 : i32
    %c0_i32_0 = arith.constant 0 : i32
    %c0_i32_1 = arith.constant 0 : i32
    return %c0_i32, %c0_i32_0 : i32, i32
  }
  func.func @transform_2(%arg0: i32, %arg1: i32) -> (i32, i32) {
    %c0_i32 = arith.constant 0 : i32
    %c0_i32_0 = arith.constant 0 : i32
    %c0_i32_1 = arith.constant 0 : i32
    return %c0_i32, %c0_i32_0 : i32, i32
  }
  func.func @transform_3(%arg0: i32, %arg1: i32) -> (i32, i32, i32) {
    %c0_i32 = arith.constant 0 : i32
    %c0_i32_0 = arith.constant 0 : i32
    return %arg1, %arg0, %c0_i32 : i32, i32, i32
  }
}

module attributes {stable_mosaic.version = 11 : i64} {
  func.func @lstm_recurrent_kernel(%arg0: i32, %arg1: i32, %arg2: memref<1x128x256xf32, #tpu.memory_space<vmem>>, %arg3: memref<64x256xbf16, #tpu.memory_space<vmem>>, %arg4: memref<64x10xf32, #tpu.memory_space<vmem>>, %arg5: memref<1x10xf32, #tpu.memory_space<vmem>>, %arg6: memref<128x10xf32, #tpu.memory_space<vmem>>, %arg7: memref<128x64xf32, #tpu.memory_space<vmem>>, %arg8: memref<128x64xf32, #tpu.memory_space<vmem>>) attributes {dimension_semantics = [#tpu.dimension_semantics<parallel>, #tpu.dimension_semantics<arbitrary>], iteration_bounds = array<i64: 2, 28>, scalar_prefetch = 0 : i64, scratch_operands = 2 : i64, tpu.core_type = #tpu.core_type<tc>, window_params = [{transform_indices = @transform_0, window_bounds = array<i64: 1, 128, 256>}, {pipeline_mode = #tpu.pipeline_mode<synchronous>, transform_indices = @transform_1, window_bounds = array<i64: 64, 256>}, {pipeline_mode = #tpu.pipeline_mode<synchronous>, transform_indices = @transform_2, window_bounds = array<i64: 64, 10>}, {pipeline_mode = #tpu.pipeline_mode<synchronous>, transform_indices = @transform_3, window_bounds = array<i64: 1, 10>}, {transform_indices = @transform_4, window_bounds = array<i64: 128, 10>}]} {
    %c0_i32 = arith.constant 0 : i32
    %0 = arith.cmpi eq, %arg1, %c0_i32 : i32
    %1 = arith.extui %0 : i1 to i32
    %c0_i32_0 = arith.constant 0 : i32
    %2 = arith.cmpi ne, %1, %c0_i32_0 : i32
    scf.if %2 {
      %cst_15 = arith.constant 0.000000e+00 : f32
      %32 = vector.broadcast %cst_15 : f32 to vector<128x64xf32>
      %c0_16 = arith.constant 0 : index
      %c0_17 = arith.constant 0 : index
      %33 = vector.load %arg7[%c0_16, %c0_17] : memref<128x64xf32, #tpu.memory_space<vmem>>, vector<128x64xf32>
      tpu.vector_store %arg7[%c0_16, %c0_17], %32 {strides = array<i32>} : memref<128x64xf32, #tpu.memory_space<vmem>>, vector<128x64xf32>,
      %cst_18 = arith.constant 0.000000e+00 : f32
      %34 = vector.broadcast %cst_18 : f32 to vector<128x64xf32>
      %c0_19 = arith.constant 0 : index
      %c0_20 = arith.constant 0 : index
      %35 = vector.load %arg8[%c0_19, %c0_20] : memref<128x64xf32, #tpu.memory_space<vmem>>, vector<128x64xf32>
      tpu.vector_store %arg8[%c0_19, %c0_20], %34 {strides = array<i32>} : memref<128x64xf32, #tpu.memory_space<vmem>>, vector<128x64xf32>,
    } else {
    }
    %c0 = arith.constant 0 : index
    %c0_1 = arith.constant 0 : index
    %3 = vector.load %arg7[%c0, %c0_1] : memref<128x64xf32, #tpu.memory_space<vmem>>, vector<128x64xf32>
    %c0_2 = arith.constant 0 : index
    %c0_3 = arith.constant 0 : index
    %4 = vector.load %arg8[%c0_2, %c0_3] : memref<128x64xf32, #tpu.memory_space<vmem>>, vector<128x64xf32>
    %c0_4 = arith.constant 0 : index
    %c0_5 = arith.constant 0 : index
    %c0_6 = arith.constant 0 : index
    %5 = vector.load %arg2[%c0_4, %c0_5, %c0_6] : memref<1x128x256xf32, #tpu.memory_space<vmem>>, vector<1x128x256xf32>
    %6 = vector.shape_cast %5 : vector<1x128x256xf32> to vector<128x256xf32>
    %7 = arith.truncf %3 : vector<128x64xf32> to vector<128x64xbf16>
    %c0_7 = arith.constant 0 : index
    %c0_8 = arith.constant 0 : index
    %8 = vector.load %arg3[%c0_7, %c0_8] : memref<64x256xbf16, #tpu.memory_space<vmem>>, vector<64x256xbf16>
    %cst = arith.constant dense<0.000000e+00> : vector<128x256xf32>
    %9 = tpu.matmul %7, %8, %cst {dimension_numbers = #tpu.dot_dimension_numbers<[1], [0], [0], [1], [0, 0, 1, 1], [], []>} : vector<128x64xbf16>, vector<64x256xbf16>, vector<128x256xf32> -> vector<128x256xf32>
    %10 = arith.addf %6, %9 : vector<128x256xf32>
    %11 = vector.extract_strided_slice %10 {offsets = [0, 0], sizes = [128, 192], strides = [1, 1]} : vector<128x256xf32> to vector<128x192xf32>
    %12 = arith.negf %11 : vector<128x192xf32>
    %13 = math.exp %12 : vector<128x192xf32>
    %cst_9 = arith.constant 1.000000e+00 : f32
    %14 = vector.broadcast %cst_9 : f32 to vector<128x192xf32>
    %15 = arith.addf %14, %13 : vector<128x192xf32>
    %16 = arith.divf %14, %15 : vector<128x192xf32>
    %17 = vector.extract_strided_slice %16 {offsets = [0, 0], sizes = [128, 64], strides = [1, 1]} : vector<128x192xf32> to vector<128x64xf32>
    %18 = vector.extract_strided_slice %16 {offsets = [0, 64], sizes = [128, 64], strides = [1, 1]} : vector<128x192xf32> to vector<128x64xf32>
    %19 = vector.extract_strided_slice %16 {offsets = [0, 128], sizes = [128, 64], strides = [1, 1]} : vector<128x192xf32> to vector<128x64xf32>
    %20 = vector.extract_strided_slice %10 {offsets = [0, 192], sizes = [128, 64], strides = [1, 1]} : vector<128x256xf32> to vector<128x64xf32>
    %21 = math.tanh %20 : vector<128x64xf32>
    %22 = arith.mulf %18, %4 : vector<128x64xf32>
    %23 = arith.mulf %17, %21 : vector<128x64xf32>
    %24 = arith.addf %22, %23 : vector<128x64xf32>
    %25 = math.tanh %24 : vector<128x64xf32>
    %26 = arith.mulf %19, %25 : vector<128x64xf32>
    %c0_10 = arith.constant 0 : index
    %c0_11 = arith.constant 0 : index
    %27 = vector.load %arg8[%c0_10, %c0_11] : memref<128x64xf32, #tpu.memory_space<vmem>>, vector<128x64xf32>
    tpu.vector_store %arg8[%c0_10, %c0_11], %24 {strides = array<i32>} : memref<128x64xf32, #tpu.memory_space<vmem>>, vector<128x64xf32>,
    %c0_12 = arith.constant 0 : index
    %c0_13 = arith.constant 0 : index
    %28 = vector.load %arg7[%c0_12, %c0_13] : memref<128x64xf32, #tpu.memory_space<vmem>>, vector<128x64xf32>
    tpu.vector_store %arg7[%c0_12, %c0_13], %26 {strides = array<i32>} : memref<128x64xf32, #tpu.memory_space<vmem>>, vector<128x64xf32>,
    %c27_i32 = arith.constant 27 : i32
    %29 = arith.cmpi eq, %arg1, %c27_i32 : i32
    %30 = arith.extui %29 : i1 to i32
    %c0_i32_14 = arith.constant 0 : i32
    %31 = arith.cmpi ne, %30, %c0_i32_14 : i32
    scf.if %31 {
      %c0_15 = arith.constant 0 : index
      %c0_16 = arith.constant 0 : index
      %32 = vector.load %arg4[%c0_15, %c0_16] : memref<64x10xf32, #tpu.memory_space<vmem>>, vector<64x10xf32>
      %cst_17 = arith.constant dense<0.000000e+00> : vector<128x10xf32>
      %33 = tpu.matmul %26, %32, %cst_17 {dimension_numbers = #tpu.dot_dimension_numbers<[1], [0], [0], [1], [0, 0, 1, 1], [], []>} : vector<128x64xf32>, vector<64x10xf32>, vector<128x10xf32> -> vector<128x10xf32>
      %c0_18 = arith.constant 0 : index
      %c0_19 = arith.constant 0 : index
      %34 = vector.load %arg5[%c0_18, %c0_19] : memref<1x10xf32, #tpu.memory_space<vmem>>, vector<1x10xf32>
      %35 = vector.broadcast %34 : vector<1x10xf32> to vector<128x10xf32>
      %36 = arith.addf %33, %35 : vector<128x10xf32>
      %c0_20 = arith.constant 0 : index
      %c0_21 = arith.constant 0 : index
      %37 = vector.load %arg6[%c0_20, %c0_21] : memref<128x10xf32, #tpu.memory_space<vmem>>, vector<128x10xf32>
      tpu.vector_store %arg6[%c0_20, %c0_21], %36 {strides = array<i32>} : memref<128x10xf32, #tpu.memory_space<vmem>>, vector<128x10xf32>,
    } else {
    }
    return
  }
  func.func @transform_0(%arg0: i32, %arg1: i32) -> (i32, i32, i32) {
    %c0_i32 = arith.constant 0 : i32
    %c0_i32_0 = arith.constant 0 : i32
    return %arg1, %arg0, %c0_i32 : i32, i32, i32
  }
  func.func @transform_1(%arg0: i32, %arg1: i32) -> (i32, i32) {
    %c0_i32 = arith.constant 0 : i32
    %c0_i32_0 = arith.constant 0 : i32
    %c0_i32_1 = arith.constant 0 : i32
    return %c0_i32, %c0_i32_0 : i32, i32
  }
  func.func @transform_2(%arg0: i32, %arg1: i32) -> (i32, i32) {
    %c0_i32 = arith.constant 0 : i32
    %c0_i32_0 = arith.constant 0 : i32
    %c0_i32_1 = arith.constant 0 : i32
    return %c0_i32, %c0_i32_0 : i32, i32
  }
  func.func @transform_3(%arg0: i32, %arg1: i32) -> (i32, i32) {
    %c0_i32 = arith.constant 0 : i32
    %c0_i32_0 = arith.constant 0 : i32
    %c0_i32_1 = arith.constant 0 : i32
    return %c0_i32, %c0_i32_0 : i32, i32
  }
  func.func @transform_4(%arg0: i32, %arg1: i32) -> (i32, i32) {
    %c0_i32 = arith.constant 0 : i32
    %c0_i32_0 = arith.constant 0 : i32
    return %arg0, %c0_i32 : i32, i32
  }
}

</mosaic_0001>

<llo_original>
// kernel: rnn_net_forward.2
$region0: #{rnn_net_forward.2}
  #allocation0 [shape = 'u32[]', space=smem, size = 0x4, offset = 0x4, fixed_abs, tag = 'smem constant byte address 0x4 - core index']
  #allocation1 [shape = 'u32[144,128]{1,0:T(1,128)}', space=vmem, size = 0x12000, scoped, tag = 'internal scratch']
  %s0 = inlined_call_operand.vmem [shape: bf16[28,256,28], index: 0, kind: input, shape index: {}]
  %s1 = inlined_call_operand.vmem [shape: bf16[28,256], index: 1, kind: input, shape index: {}]
  %s2 = inlined_call_operand.vmem [shape: f32[1,256], index: 2, kind: input, shape index: {}]
  %s3 = inlined_call_operand.vmem [shape: f32[28,256,256], index: 3, kind: output, shape index: {}]
  %s4 = sld [smem:[#allocation0]]
  $region45: #{rnn_net_forward.2} parent=0
    _
  %s6 = ssub.s32 1, %s4
  %s7 = scalar_select 0, %s6, %s4
  loop: start=0, step=1, limit=58
  $region2: #{rnn_net_forward.2} parent=0 // loop_pre_header
    _
  $region3: #{rnn_net_forward.2} parent=0 // loop_header
    %s9 = sphi 0, %s13
    %p10 = scmp.ge.s32.totalorder %s9, 58
    %s16 = sphi 0, %s28
    %s17 = sphi 0, %s24
    %s18 = sphi 0, %s16
    %s19 = sphi 0, %s17
    %s20 = sphi 0, %s18
    %s21 = sphi 0, %s19
    %s33 = sphi 0, %s35
    %s36 = sphi 0, %s33
    %s37 = sphi 0, %s36
    %s53 = sphi 0, %s37
    %s57 = sphi 0, %s57
    %s59 = sphi 0, %s57
    %s60 = sphi 0, %s59
    %s74 = sphi 0, %s60
    %s78 = sphi 0, %s78
    %s80 = sphi 0, %s78
    %s81 = sphi 0, %s80
    %s95 = sphi 0, %s81
    %s103 = sphi 0, %s105
    %s106 = sphi 0, %s103
    %s107 = sphi 0, %s106
    %s123 = sphi 0, %s107
  $region4: #{rnn_net_forward.2} parent=0 // loop_header_branch
    %12 = sbr.rel (%p10) target = $region8
  $region5: #{rnn_net_forward.2} parent=0 // loop_body
    %s14 = ssub.s32 %s9, 1
    %s15 = ssub.s32 %s9, 2
    %s22 = sadd.s32 1, %s17
    %p23 = scmp.ge.s32.totalorder %s22, 28
    %s24 = scalar_select %p23, 0, %s22
    %s25 = sadd.s32 1, %s16
    %s26 = scalar_select %p23, %s25, %s16
    %p27 = scmp.ge.s32.totalorder %s26, 2
    %s28 = scalar_select %p27, 0, %s26
    %s29 = ssub.s32 %s17, %s24
    %s30 = ssub.s32 %s16, %s28
    %s31 = sor.u32 %s29, %s30
    %p32 = scmp.eq.s32.totalorder %s31, 0
    %s34 = sadd.s32 %s33, 1
    %s35 = scalar_select %p32, %s33, %s34
    %p38 = pneg %p32
    %p39 = scmp.eq.s32.totalorder %s9, 55
    %p40 = por %p38, %p39
    %p41 = scmp.ne.s32.totalorder %s33, %s36
    %p42 = scmp.eq.s32.totalorder %s9, 0
    %p43 = por %p41, %p42
    %p44 = scmp.ne.s32.totalorder %s33, %s36
    %p45 = scmp.eq.s32.totalorder %s14, 55
    %p46 = por %p44, %p45
    %p47 = scmp.ne.s32.totalorder %s36, %s37
    %p48 = scmp.eq.s32.totalorder %s14, 0
    %p49 = por %p47, %p48
    %p50 = scmp.ne.s32.totalorder %s36, %s37
    %p51 = scmp.eq.s32.totalorder %s15, 55
    %p52 = por %p50, %p51
    %p54 = scmp.ne.s32.totalorder %s37, %s53
    %p55 = scmp.eq.s32.totalorder %s15, 0
    %p56 = por %p54, %p55
    %s58 = sadd.s32 %s57, 1
    %p61 = scmp.eq.s32.totalorder %s9, 55
    %p62 = scmp.ne.s32.totalorder %s57, %s59
    %p63 = scmp.eq.s32.totalorder %s9, 0
    %p64 = por %p62, %p63
    %p65 = scmp.ne.s32.totalorder %s57, %s59
    %p66 = scmp.eq.s32.totalorder %s14, 55
    %p67 = por %p65, %p66
    %p68 = scmp.ne.s32.totalorder %s59, %s60
    %p69 = scmp.eq.s32.totalorder %s14, 0
    %p70 = por %p68, %p69
    %p71 = scmp.ne.s32.totalorder %s59, %s60
    %p72 = scmp.eq.s32.totalorder %s15, 55
    %p73 = por %p71, %p72
    %p75 = scmp.ne.s32.totalorder %s60, %s74
    %p76 = scmp.eq.s32.totalorder %s15, 0
    %p77 = por %p75, %p76
    %s79 = sadd.s32 %s78, 1
    %p82 = scmp.eq.s32.totalorder %s9, 55
    %p83 = scmp.ne.s32.totalorder %s78, %s80
    %p84 = scmp.eq.s32.totalorder %s9, 0
    %p85 = por %p83, %p84
    %p86 = scmp.ne.s32.totalorder %s78, %s80
    %p87 = scmp.eq.s32.totalorder %s14, 55
    %p88 = por %p86, %p87
    %p89 = scmp.ne.s32.totalorder %s80, %s81
    %p90 = scmp.eq.s32.totalorder %s14, 0
    %p91 = por %p89, %p90
    %p92 = scmp.ne.s32.totalorder %s80, %s81
    %p93 = scmp.eq.s32.totalorder %s15, 55
    %p94 = por %p92, %p93
    %p96 = scmp.ne.s32.totalorder %s81, %s95
    %p97 = scmp.eq.s32.totalorder %s15, 0
    %p98 = por %p96, %p97
    %s99 = ssub.s32 %s17, %s24
    %s100 = ssub.s32 %s16, %s28
    %s101 = sor.u32 %s99, %s100
    %p102 = scmp.eq.s32.totalorder %s101, 0
    %s104 = sadd.s32 %s103, 1
    %s105 = scalar_select %p102, %s103, %s104
    %p108 = pneg %p102
    %p109 = scmp.eq.s32.totalorder %s9, 55
    %p110 = por %p108, %p109
    %p111 = scmp.ne.s32.totalorder %s103, %s106
    %p112 = scmp.eq.s32.totalorder %s9, 0
    %p113 = por %p111, %p112
    %p114 = scmp.ne.s32.totalorder %s103, %s106
    %p115 = scmp.eq.s32.totalorder %s14, 55
    %p116 = por %p114, %p115
    %p117 = scmp.ne.s32.totalorder %s106, %s107
    %p118 = scmp.eq.s32.totalorder %s14, 0
    %p119 = por %p117, %p118
    %p120 = scmp.ne.s32.totalorder %s106, %s107
    %p121 = scmp.eq.s32.totalorder %s15, 55
    %p122 = por %p120, %p121
    %p124 = scmp.ne.s32.totalorder %s107, %s123
    %p125 = scmp.eq.s32.totalorder %s15, 0
    %p126 = por %p124, %p125
    %p127 = scmp.le.s32.totalorder 1, %s9
    %p128 = scmp.lt.s32.totalorder %s9, 57
    %p129 = pnand %p127, %p128
    %p130 = pneg %p129
    // Predicated region
    $region9: #{rnn_net_forward.2} parent=5 // pred_check
      _
    $region10: #{rnn_net_forward.2} parent=5 // pred_check_branch
      %132 = sbr.rel (%p129) target = $region12
    $region11: #{rnn_net_forward.2} parent=5 // pred_region
      %s133 = ssub.s32 %s9, 1
      // Predicated region
      $region13: #{rnn_net_forward.2} parent=11 // pred_check
        %p134 = pneg %p70
      $region14: #{rnn_net_forward.2} parent=11 // pred_check_branch
        %136 = sbr.rel (%p134) target = $region16
      $region15: #{rnn_net_forward.2} parent=11 // pred_region
        _
      $region16: #{rnn_net_forward.2} parent=11 // pred_fallthru
        _
      // Predicated region
      $region17: #{rnn_net_forward.2} parent=11 // pred_check
        %p137 = pneg %p91
      $region18: #{rnn_net_forward.2} parent=11 // pred_check_branch
        %139 = sbr.rel (%p137) target = $region20
      $region19: #{rnn_net_forward.2} parent=11 // pred_region
        _
      $region20: #{rnn_net_forward.2} parent=11 // pred_fallthru
        _
    $region12: #{rnn_net_forward.2} parent=5 // pred_fallthru
      _
    %p140 = scmp.lt.s32.totalorder %s9, 56
    // Predicated region
    $region21: #{rnn_net_forward.2} parent=5 // pred_check
      %p141 = pneg %p140
    $region22: #{rnn_net_forward.2} parent=5 // pred_check_branch
      %143 = sbr.rel (%p141) target = $region24
    $region23: #{rnn_net_forward.2} parent=5 // pred_region
      // Predicated region
      $region25: #{rnn_net_forward.2} parent=23 // pred_check
        %p144 = pneg %p43
      $region26: #{rnn_net_forward.2} parent=23 // pred_check_branch
        %146 = sbr.rel (%p144) target = $region28
      $region27: #{rnn_net_forward.2} parent=23 // pred_region
        %s147 = smul.u32 16, %s16
        %p148 = scmp.lt.s32.totalorder %s17, 27
        %s149 = scalar_select %p148, %s17, 27
        %p150 = scmp.lt.s32.totalorder %s147, 31
        %s151 = scalar_select %p150, %s147, 31
        %s152 = smul.addr %s149, 32
        %s153 = sadd.s32 %s151, %s152
        %s154 = smul.addr %s153, 4
        %s155 = scalar_lea.vmem %s0, %s154
        %s156 = smul.u32 16, %s16
      $region28: #{rnn_net_forward.2} parent=23 // pred_fallthru
        _
    $region24: #{rnn_net_forward.2} parent=5 // pred_fallthru
      _
    %p157 = scmp.le.s32.totalorder 1, %s9
    %p158 = scmp.lt.s32.totalorder %s9, 57
    %p159 = pnand %p157, %p158
    %p160 = pneg %p159
    // Predicated region
    $region29: #{rnn_net_forward.2} parent=5 // pred_check
      _
    $region30: #{rnn_net_forward.2} parent=5 // pred_check_branch
      %162 = sbr.rel (%p159) target = $region32
    $region31: #{rnn_net_forward.2} parent=5 // pred_region
      %s163 = ssub.s32 %s9, 1
      %s164 = smul.u32 16, %s18
      %p165 = scmp.lt.s32.totalorder %s19, 27
      %s166 = scalar_select %p165, %s19, 27
      %p167 = scmp.lt.s32.totalorder %s164, 31
      %s168 = scalar_select %p167, %s164, 31
      %s169 = smul.addr %s166, 32
      %s170 = sadd.s32 %s168, %s169
      %s171 = smul.addr %s170, 4
      %s172 = scalar_lea.vmem %s0, %s171
      %p173 = pneg %p49
      %p174 = pneg %p46
      %p175 = pneg %p70
      %p176 = pneg %p67
      %p177 = pneg %p91
      %p178 = pneg %p88
      %p179 = pneg %p119
      %p180 = pneg %p116
      %s181 = smul.u32 16, %s18
      %p182 = scmp.lt.s32.totalorder %s19, 27
      %s183 = scalar_select %p182, %s19, 27
      %p184 = scmp.lt.s32.totalorder %s181, 31
      %s185 = scalar_select %p184, %s181, 31
      %s186 = smul.addr %s185, 2
      %s187 = smul.addr %s183, 64
      %s188 = sadd.s32 %s186, %s187
      %s189 = smul.addr %s188, 8
      %s190 = scalar_lea.vmem %s3, %s189
      %s191 = smul.u32 16, %s18
      %p192 = scmp.lt.s32.totalorder %s19, 27
      %s193 = scalar_select %p192, %s19, 27
      %p194 = scmp.lt.s32.totalorder %s191, 31
      %s195 = scalar_select %p194, %s191, 31
      %s196 = smul.addr %s193, 32
      %s197 = sadd.s32 %s195, %s196
      %s198 = smul.addr %s197, 4
      %s199 = scalar_lea.vmem %s0, %s198
      %s200 = smul.u32 16, %s18
      %s201 = smul.u32 16, %s18
      %p202 = scmp.lt.s32.totalorder %s19, 27
      %s203 = scalar_select %p202, %s19, 27
      %p204 = scmp.lt.s32.totalorder %s201, 31
      %s205 = scalar_select %p204, %s201, 31
      %s206 = smul.addr %s205, 2
      %s207 = smul.addr %s203, 64
      %s208 = sadd.s32 %s206, %s207
      %s209 = smul.addr %s208, 8
      %s210 = scalar_lea.vmem %s3, %s209
      %s211 = smul.u32 16, %s18
      %v213 = vld [vmem:[%s199] sm:$0xf]
      %v214 = vld [vmem:[%s199 + $0x4] sm:$0xf]
      %v215 = vld [vmem:[%s199 + $0x8] sm:$0xf]
      %v216 = vld [vmem:[%s199 + $0xc] sm:$0xf]
      %v217 = vld [vmem:[%s199 + $0x10] sm:$0xf]
      %v218 = vld [vmem:[%s199 + $0x14] sm:$0xf]
      %v219 = vld [vmem:[%s199 + $0x18] sm:$0xf]
      %v220 = vld [vmem:[%s199 + $0x1c] sm:$0xf]
      %v221 = vld [vmem:[%s199 + $0x20] sm:$0xf]
      %v222 = vld [vmem:[%s199 + $0x24] sm:$0xf]
      %v223 = vld [vmem:[%s199 + $0x28] sm:$0xf]
      %v224 = vld [vmem:[%s199 + $0x2c] sm:$0xf]
      %v225 = vld [vmem:[%s199 + $0x30] sm:$0xf]
      %v226 = vld [vmem:[%s199 + $0x34] sm:$0xf]
      %v227 = vld [vmem:[%s199 + $0x38] sm:$0xf]
      %v228 = vld [vmem:[%s199 + $0x3c] sm:$0xf]
      %v229 = vld [vmem:[%s1] sm:$0xff]
      %v230 = vld [vmem:[%s1 + $0x8] sm:$0xff]
      %v231 = vld [vmem:[%s1 + $0x10] sm:$0xff]
      %v232 = vld [vmem:[%s1 + $0x18] sm:$0x33]
      %v233 = vld [vmem:[%s2] sm:$0x3]
      %v235 = vlaneseq
      %v236 = vshrl.u32 %v235, 7
      %v237 = vsub.s32 0, %v236
      %v238 = vrot.slane %v233, %v237
      %v239 = vlaneseq
      %v240 = vshrl.u32 %v239, 7
      %v241 = vsub.s32 1, %v240
      %v242 = vrot.slane %v233, %v241
      %v261 = vunpack.c.l.b16 %v213
      %v262 = vunpack.c.l.b16 %v214
      %v263 = vunpack.c.l.b16 %v215
      %v264 = vunpack.c.l.b16 %v216
      %v265 = vunpack.c.l.b16 %v217
      %v266 = vunpack.c.l.b16 %v218
      %v267 = vunpack.c.l.b16 %v219
      %v268 = vunpack.c.l.b16 %v220
      %v269 = vunpack.c.l.b16 %v221
      %v270 = vunpack.c.l.b16 %v222
      %v271 = vunpack.c.l.b16 %v223
      %v272 = vunpack.c.l.b16 %v224
      %v273 = vunpack.c.l.b16 %v225
      %v274 = vunpack.c.l.b16 %v226
      %v275 = vunpack.c.l.b16 %v227
      %v276 = vunpack.c.l.b16 %v228
      %v277 = vpack.c.b16 %v262, %v261
      %v278 = vpack.c.b16 %v264, %v263
      %v279 = vpack.c.b16 %v266, %v265
      %v280 = vpack.c.b16 %v268, %v267
      %v281 = vpack.c.b16 %v270, %v269
      %v282 = vpack.c.b16 %v272, %v271
      %v283 = vpack.c.b16 %v274, %v273
      %v284 = vpack.c.b16 %v276, %v275
      %v289 = vunpack.c.l.b16 %v229
      %v290 = vunpack.c.h.b16 %v229
      %v291 = vunpack.c.l.b16 %v230
      %v292 = vunpack.c.h.b16 %v230
      %v293 = vunpack.c.l.b16 %v231
      %v294 = vunpack.c.h.b16 %v231
      %v295 = vunpack.c.l.b16 %v232
      %v296 = vunpack.c.h.b16 %v232
      %v297 = vpack.c.b16 %v291, %v289
      %v298 = vpack.c.b16 %v292, %v290
      %v299 = vpack.c.b16 %v295, %v293
      %v300 = vpack.c.b16 %v296, %v294
      %vm303 = vcmask 228352
      %v305 = vsel %vm303, %v277, 0
      %v308 = vsel %vm303, %v278, 0
      %v311 = vsel %vm303, %v279, 0
      %v314 = vsel %vm303, %v280, 0
      %v317 = vsel %vm303, %v281, 0
      %v320 = vsel %vm303, %v282, 0
      %v323 = vsel %vm303, %v283, 0
      %v326 = vsel %vm303, %v284, 0
      %vm328 = vcmask 1045504
      %v330 = vsel %vm328, %v299, 0
      %v333 = vsel %vm328, %v300, 0
      %335 = vmatprep.subr.bf16.mxu0 %v298
      %336 = vmatpush1.bf16.msra.mxu0 %v297
      %337 = vmatprep.subr.bf16.mxu0 %v333
      %338 = vmatpush1.bf16.msra.mxu0 %v330
      %339 = vmatprep.subr.bf16.mxu0 0
      %340 = vmatpush1.bf16.msra.mxu0 0
      %341 = vmatprep.subr.bf16.mxu0 0
      %342 = vmatpush1.bf16.msra.mxu0 0
      %343 = vmatprep.subr.bf16.mxu0 0
      %344 = vmatpush1.bf16.msra.mxu0 0
      %345 = vmatprep.subr.bf16.mxu0 0
      %346 = vmatpush1.bf16.msra.mxu0 0
      %347 = vmatprep.subr.bf16.mxu0 0
      %348 = vmatpush1.bf16.msra.mxu0 0
      %349 = vmatprep.subr.bf16.mxu0 0
      %350 = vmatpush1.bf16.msra.mxu0 0
      %351 = vmatprep.subr.bf16.mxu0 0
      %352 = vmatpush1.bf16.msra.mxu0 0
      %353 = vmatprep.subr.bf16.mxu0 0
      %354 = vmatpush1.bf16.msra.mxu0 0
      %355 = vmatprep.subr.bf16.mxu0 0
      %356 = vmatpush1.bf16.msra.mxu0 0
      %357 = vmatprep.subr.bf16.mxu0 0
      %358 = vmatpush1.bf16.msra.mxu0 0
      %359 = vmatprep.subr.bf16.mxu0 0
      %360 = vmatpush1.bf16.msra.mxu0 0
      %361 = vmatprep.subr.bf16.mxu0 0
      %362 = vmatpush1.bf16.msra.mxu0 0
      %363 = vmatprep.subr.bf16.mxu0 0
      %364 = vmatpush1.bf16.msra.mxu0 0
      %365 = vmatprep.subr.bf16.mxu0 0
      %366 = vmatpush1.bf16.msra.mxu0 0
      %367 = vmatprep.mubr.bf16.mxu0 0
      %368 = vmatmul.mubr.bf16.gmra.mrb[0].mxu0 %v305
      %v369 = vpop.f32.mrb[0].mxu0
      %v370 = vadd.f32 %v238, %v369
      %v371 = vpop.f32.mrb[0].mxu0
      %v372 = vadd.f32 %v242, %v371
      %v373 = vpop.f32.mrb[0].mxu0
      %v374 = vadd.f32 %v238, %v373
      %v375 = vpop.f32.mrb[0].mxu0
      %v376 = vadd.f32 %v242, %v375
      %377 = vmatprep.mubr.bf16.mxu0 0
      %378 = vmatmul.mubr.bf16.gmra.mrb[0].mxu0 %v308
      %v379 = vpop.f32.mrb[0].mxu0
      %v380 = vadd.f32 %v238, %v379
      %v381 = vpop.f32.mrb[0].mxu0
      %v382 = vadd.f32 %v242, %v381
      %v383 = vpop.f32.mrb[0].mxu0
      %v384 = vadd.f32 %v238, %v383
      %v385 = vpop.f32.mrb[0].mxu0
      %v386 = vadd.f32 %v242, %v385
      %387 = vmatprep.mubr.bf16.mxu0 0
      %388 = vmatmul.mubr.bf16.gmra.mrb[0].mxu0 %v311
      %v389 = vpop.f32.mrb[0].mxu0
      %v390 = vadd.f32 %v238, %v389
      %v391 = vpop.f32.mrb[0].mxu0
      %v392 = vadd.f32 %v242, %v391
      %v393 = vpop.f32.mrb[0].mxu0
      %v394 = vadd.f32 %v238, %v393
      %v395 = vpop.f32.mrb[0].mxu0
      %v396 = vadd.f32 %v242, %v395
      %397 = vmatprep.mubr.bf16.mxu0 0
      %398 = vmatmul.mubr.bf16.gmra.mrb[0].mxu0 %v314
      %v399 = vpop.f32.mrb[0].mxu0
      %v400 = vadd.f32 %v238, %v399
      %v401 = vpop.f32.mrb[0].mxu0
      %v402 = vadd.f32 %v242, %v401
      %v403 = vpop.f32.mrb[0].mxu0
      %v404 = vadd.f32 %v238, %v403
      %v405 = vpop.f32.mrb[0].mxu0
      %v406 = vadd.f32 %v242, %v405
      %407 = vmatprep.mubr.bf16.mxu0 0
      %408 = vmatmul.mubr.bf16.gmra.mrb[0].mxu0 %v317
      %v409 = vpop.f32.mrb[0].mxu0
      %v410 = vadd.f32 %v238, %v409
      %v411 = vpop.f32.mrb[0].mxu0
      %v412 = vadd.f32 %v242, %v411
      %v413 = vpop.f32.mrb[0].mxu0
      %v414 = vadd.f32 %v238, %v413
      %v415 = vpop.f32.mrb[0].mxu0
      %v416 = vadd.f32 %v242, %v415
      %417 = vmatprep.mubr.bf16.mxu0 0
      %418 = vmatmul.mubr.bf16.gmra.mrb[0].mxu0 %v320
      %v419 = vpop.f32.mrb[0].mxu0
      %v420 = vadd.f32 %v238, %v419
      %v421 = vpop.f32.mrb[0].mxu0
      %v422 = vadd.f32 %v242, %v421
      %v423 = vpop.f32.mrb[0].mxu0
      %v424 = vadd.f32 %v238, %v423
      %v425 = vpop.f32.mrb[0].mxu0
      %v426 = vadd.f32 %v242, %v425
      %427 = vmatprep.mubr.bf16.mxu0 0
      %428 = vmatmul.mubr.bf16.gmra.mrb[0].mxu0 %v323
      %v429 = vpop.f32.mrb[0].mxu0
      %v430 = vadd.f32 %v238, %v429
      %v431 = vpop.f32.mrb[0].mxu0
      %v432 = vadd.f32 %v242, %v431
      %v433 = vpop.f32.mrb[0].mxu0
      %v434 = vadd.f32 %v238, %v433
      %v435 = vpop.f32.mrb[0].mxu0
      %v436 = vadd.f32 %v242, %v435
      %437 = vmatprep.mubr.bf16.mxu0 0
      %438 = vmatmul.mubr.bf16.gmra.mrb[0].mxu0 %v326
      %v439 = vpop.f32.mrb[0].mxu0
      %v440 = vadd.f32 %v238, %v439
      %v441 = vpop.f32.mrb[0].mxu0
      %v442 = vadd.f32 %v242, %v441
      %v443 = vpop.f32.mrb[0].mxu0
      %v444 = vadd.f32 %v238, %v443
      %v445 = vpop.f32.mrb[0].mxu0
      %v446 = vadd.f32 %v242, %v445
      %447 = vdwg.mxu0
      %448 = vst [vmem:[%s210] sm:$0xff] %v370
      %449 = vst [vmem:[%s210 + $0x8] sm:$0xff] %v372
      %450 = vst [vmem:[%s210 + $0x10] sm:$0xff] %v374
      %451 = vst [vmem:[%s210 + $0x18] sm:$0xff] %v376
      %452 = vst [vmem:[%s210 + $0x20] sm:$0xff] %v380
      %453 = vst [vmem:[%s210 + $0x28] sm:$0xff] %v382
      %454 = vst [vmem:[%s210 + $0x30] sm:$0xff] %v384
      %455 = vst [vmem:[%s210 + $0x38] sm:$0xff] %v386
      %456 = vst [vmem:[%s210 + $0x40] sm:$0xff] %v390
      %457 = vst [vmem:[%s210 + $0x48] sm:$0xff] %v392
      %458 = vst [vmem:[%s210 + $0x50] sm:$0xff] %v394
      %459 = vst [vmem:[%s210 + $0x58] sm:$0xff] %v396
      %460 = vst [vmem:[%s210 + $0x60] sm:$0xff] %v400
      %461 = vst [vmem:[%s210 + $0x68] sm:$0xff] %v402
      %462 = vst [vmem:[%s210 + $0x70] sm:$0xff] %v404
      %463 = vst [vmem:[%s210 + $0x78] sm:$0xff] %v406
      %464 = vst [vmem:[%s210 + $0x80] sm:$0xff] %v410
      %465 = vst [vmem:[%s210 + $0x88] sm:$0xff] %v412
      %466 = vst [vmem:[%s210 + $0x90] sm:$0xff] %v414
      %467 = vst [vmem:[%s210 + $0x98] sm:$0xff] %v416
      %468 = vst [vmem:[%s210 + $0xa0] sm:$0xff] %v420
      %469 = vst [vmem:[%s210 + $0xa8] sm:$0xff] %v422
      %470 = vst [vmem:[%s210 + $0xb0] sm:$0xff] %v424
      %471 = vst [vmem:[%s210 + $0xb8] sm:$0xff] %v426
      %472 = vst [vmem:[%s210 + $0xc0] sm:$0xff] %v430
      %473 = vst [vmem:[%s210 + $0xc8] sm:$0xff] %v432
      %474 = vst [vmem:[%s210 + $0xd0] sm:$0xff] %v434
      %475 = vst [vmem:[%s210 + $0xd8] sm:$0xff] %v436
      %476 = vst [vmem:[%s210 + $0xe0] sm:$0xff] %v440
      %477 = vst [vmem:[%s210 + $0xe8] sm:$0xff] %v442
      %478 = vst [vmem:[%s210 + $0xf0] sm:$0xff] %v444
      %479 = vst [vmem:[%s210 + $0xf8] sm:$0xff] %v446
      %s480 = smul.u32 16, %s18
      %p481 = scmp.lt.s32.totalorder %s19, 27
      %s482 = scalar_select %p481, %s19, 27
      %p483 = scmp.lt.s32.totalorder %s480, 31
      %s484 = scalar_select %p483, %s480, 31
      %s485 = smul.addr %s484, 2
      %s486 = smul.addr %s482, 64
      %s487 = sadd.s32 %s485, %s486
      %s488 = smul.addr %s487, 8
      %s489 = scalar_lea.vmem %s3, %s488
      // Predicated region
      $region33: #{rnn_net_forward.2} parent=31 // pred_check
        %p490 = pneg %p116
      $region34: #{rnn_net_forward.2} parent=31 // pred_check_branch
        %492 = sbr.rel (%p490) target = $region36
      $region35: #{rnn_net_forward.2} parent=31 // pred_region
        %s493 = smul.u32 16, %s18
      $region36: #{rnn_net_forward.2} parent=31 // pred_fallthru
        _
    $region32: #{rnn_net_forward.2} parent=5 // pred_fallthru
      _
    %p494 = scmp.le.s32.totalorder 2, %s9
    // Predicated region
    $region37: #{rnn_net_forward.2} parent=5 // pred_check
      %p495 = pneg %p494
    $region38: #{rnn_net_forward.2} parent=5 // pred_check_branch
      %497 = sbr.rel (%p495) target = $region40
    $region39: #{rnn_net_forward.2} parent=5 // pred_region
      %s498 = ssub.s32 %s9, 2
      // Predicated region
      $region41: #{rnn_net_forward.2} parent=39 // pred_check
        %p499 = pneg %p122
      $region42: #{rnn_net_forward.2} parent=39 // pred_check_branch
        %501 = sbr.rel (%p499) target = $region44
      $region43: #{rnn_net_forward.2} parent=39 // pred_region
        %s502 = smul.u32 16, %s20
        %p503 = scmp.lt.s32.totalorder %s21, 27
        %s504 = scalar_select %p503, %s21, 27
        %p505 = scmp.lt.s32.totalorder %s502, 31
        %s506 = scalar_select %p505, %s502, 31
        %s507 = smul.addr %s506, 2
        %s508 = smul.addr %s504, 64
        %s509 = sadd.s32 %s507, %s508
        %s510 = smul.addr %s509, 8
        %s511 = scalar_lea.vmem %s3, %s510
      $region44: #{rnn_net_forward.2} parent=39 // pred_fallthru
        _
    $region40: #{rnn_net_forward.2} parent=5 // pred_fallthru
      _
  $region6: #{rnn_net_forward.2} parent=0 // loop_footer
    %s13 = sadd.s32 1, %s9
  $region7: #{rnn_net_forward.2} parent=0 // loop_footer_branch
    %8 = sbr.rel target = $region3
  $region8: #{rnn_net_forward.2} parent=0 // loop_exit
    _

// kernel: rnn_net_forward.3
$region0: #{rnn_net_forward.3}
  #allocation0 [shape = 'u32[]', space=smem, size = 0x4, offset = 0x4, fixed_abs, tag = 'smem constant byte address 0x4 - core index']
  #allocation1 [shape = 'u32[144,128]{1,0:T(1,128)}', space=vmem, size = 0x12000, scoped, tag = 'internal scratch']
  #allocation2 [shape = 'f32[128,64]{1,0:T(8,128)}', space=vmem, size = 0x10000, scoped, tag = 'scratch operand']
  #allocation3 [shape = 'f32[128,64]{1,0:T(8,128)}', space=vmem, size = 0x10000, scoped, tag = 'scratch operand']
  %s0 = inlined_call_operand.vmem [shape: f32[28,256,256], index: 0, kind: input, shape index: {}]
  %s1 = inlined_call_operand.vmem [shape: bf16[64,256], index: 1, kind: input, shape index: {}]
  %s2 = inlined_call_operand.vmem [shape: f32[64,10], index: 2, kind: input, shape index: {}]
  %s3 = inlined_call_operand.vmem [shape: f32[1,10], index: 3, kind: input, shape index: {}]
  %s4 = inlined_call_operand.vmem [shape: f32[256,10], index: 4, kind: output, shape index: {}]
  %s5 = sld [smem:[#allocation0]]
  $region57: #{rnn_net_forward.3} parent=0
    _
  %s7 = ssub.s32 1, %s5
  %s8 = scalar_select 0, %s7, %s5
  loop: start=0, step=1, limit=58
  $region2: #{rnn_net_forward.3} parent=0 // loop_pre_header
    _
  $region3: #{rnn_net_forward.3} parent=0 // loop_header
    %s10 = sphi 0, %s14
    %p11 = scmp.ge.s32.totalorder %s10, 58
    %s17 = sphi 0, %s29
    %s18 = sphi 0, %s25
    %s19 = sphi 0, %s17
    %s20 = sphi 0, %s18
    %s21 = sphi 0, %s19
    %s22 = sphi 0, %s20
    %s34 = sphi 0, %s36
    %s37 = sphi 0, %s34
    %s38 = sphi 0, %s37
    %s54 = sphi 0, %s38
    %s58 = sphi 0, %s58
    %s60 = sphi 0, %s58
    %s61 = sphi 0, %s60
    %s75 = sphi 0, %s61
    %s79 = sphi 0, %s79
    %s81 = sphi 0, %s79
    %s82 = sphi 0, %s81
    %s96 = sphi 0, %s82
    %s100 = sphi 0, %s100
    %s102 = sphi 0, %s100
    %s103 = sphi 0, %s102
    %s117 = sphi 0, %s103
    %s123 = sphi 0, %s125
    %s126 = sphi 0, %s123
    %s127 = sphi 0, %s126
    %s143 = sphi 0, %s127
  $region4: #{rnn_net_forward.3} parent=0 // loop_header_branch
    %13 = sbr.rel (%p11) target = $region8
  $region5: #{rnn_net_forward.3} parent=0 // loop_body
    %s15 = ssub.s32 %s10, 1
    %s16 = ssub.s32 %s10, 2
    %s23 = sadd.s32 1, %s18
    %p24 = scmp.ge.s32.totalorder %s23, 28
    %s25 = scalar_select %p24, 0, %s23
    %s26 = sadd.s32 1, %s17
    %s27 = scalar_select %p24, %s26, %s17
    %p28 = scmp.ge.s32.totalorder %s27, 2
    %s29 = scalar_select %p28, 0, %s27
    %s30 = ssub.s32 %s18, %s25
    %s31 = ssub.s32 %s17, %s29
    %s32 = sor.u32 %s30, %s31
    %p33 = scmp.eq.s32.totalorder %s32, 0
    %s35 = sadd.s32 %s34, 1
    %s36 = scalar_select %p33, %s34, %s35
    %p39 = pneg %p33
    %p40 = scmp.eq.s32.totalorder %s10, 55
    %p41 = por %p39, %p40
    %p42 = scmp.ne.s32.totalorder %s34, %s37
    %p43 = scmp.eq.s32.totalorder %s10, 0
    %p44 = por %p42, %p43
    %p45 = scmp.ne.s32.totalorder %s34, %s37
    %p46 = scmp.eq.s32.totalorder %s15, 55
    %p47 = por %p45, %p46
    %p48 = scmp.ne.s32.totalorder %s37, %s38
    %p49 = scmp.eq.s32.totalorder %s15, 0
    %p50 = por %p48, %p49
    %p51 = scmp.ne.s32.totalorder %s37, %s38
    %p52 = scmp.eq.s32.totalorder %s16, 55
    %p53 = por %p51, %p52
    %p55 = scmp.ne.s32.totalorder %s38, %s54
    %p56 = scmp.eq.s32.totalorder %s16, 0
    %p57 = por %p55, %p56
    %s59 = sadd.s32 %s58, 1
    %p62 = scmp.eq.s32.totalorder %s10, 55
    %p63 = scmp.ne.s32.totalorder %s58, %s60
    %p64 = scmp.eq.s32.totalorder %s10, 0
    %p65 = por %p63, %p64
    %p66 = scmp.ne.s32.totalorder %s58, %s60
    %p67 = scmp.eq.s32.totalorder %s15, 55
    %p68 = por %p66, %p67
    %p69 = scmp.ne.s32.totalorder %s60, %s61
    %p70 = scmp.eq.s32.totalorder %s15, 0
    %p71 = por %p69, %p70
    %p72 = scmp.ne.s32.totalorder %s60, %s61
    %p73 = scmp.eq.s32.totalorder %s16, 55
    %p74 = por %p72, %p73
    %p76 = scmp.ne.s32.totalorder %s61, %s75
    %p77 = scmp.eq.s32.totalorder %s16, 0
    %p78 = por %p76, %p77
    %s80 = sadd.s32 %s79, 1
    %p83 = scmp.eq.s32.totalorder %s10, 55
    %p84 = scmp.ne.s32.totalorder %s79, %s81
    %p85 = scmp.eq.s32.totalorder %s10, 0
    %p86 = por %p84, %p85
    %p87 = scmp.ne.s32.totalorder %s79, %s81
    %p88 = scmp.eq.s32.totalorder %s15, 55
    %p89 = por %p87, %p88
    %p90 = scmp.ne.s32.totalorder %s81, %s82
    %p91 = scmp.eq.s32.totalorder %s15, 0
    %p92 = por %p90, %p91
    %p93 = scmp.ne.s32.totalorder %s81, %s82
    %p94 = scmp.eq.s32.totalorder %s16, 55
    %p95 = por %p93, %p94
    %p97 = scmp.ne.s32.totalorder %s82, %s96
    %p98 = scmp.eq.s32.totalorder %s16, 0
    %p99 = por %p97, %p98
    %s101 = sadd.s32 %s100, 1
    %p104 = scmp.eq.s32.totalorder %s10, 55
    %p105 = scmp.ne.s32.totalorder %s100, %s102
    %p106 = scmp.eq.s32.totalorder %s10, 0
    %p107 = por %p105, %p106
    %p108 = scmp.ne.s32.totalorder %s100, %s102
    %p109 = scmp.eq.s32.totalorder %s15, 55
    %p110 = por %p108, %p109
    %p111 = scmp.ne.s32.totalorder %s102, %s103
    %p112 = scmp.eq.s32.totalorder %s15, 0
    %p113 = por %p111, %p112
    %p114 = scmp.ne.s32.totalorder %s102, %s103
    %p115 = scmp.eq.s32.totalorder %s16, 55
    %p116 = por %p114, %p115
    %p118 = scmp.ne.s32.totalorder %s103, %s117
    %p119 = scmp.eq.s32.totalorder %s16, 0
    %p120 = por %p118, %p119
    %s121 = ssub.s32 %s17, %s29
    %p122 = scmp.eq.s32.totalorder %s121, 0
    %s124 = sadd.s32 %s123, 1
    %s125 = scalar_select %p122, %s123, %s124
    %p128 = pneg %p122
    %p129 = scmp.eq.s32.totalorder %s10, 55
    %p130 = por %p128, %p129
    %p131 = scmp.ne.s32.totalorder %s123, %s126
    %p132 = scmp.eq.s32.totalorder %s10, 0
    %p133 = por %p131, %p132
    %p134 = scmp.ne.s32.totalorder %s123, %s126
    %p135 = scmp.eq.s32.totalorder %s15, 55
    %p136 = por %p134, %p135
    %p137 = scmp.ne.s32.totalorder %s126, %s127
    %p138 = scmp.eq.s32.totalorder %s15, 0
    %p139 = por %p137, %p138
    %p140 = scmp.ne.s32.totalorder %s126, %s127
    %p141 = scmp.eq.s32.totalorder %s16, 55
    %p142 = por %p140, %p141
    %p144 = scmp.ne.s32.totalorder %s127, %s143
    %p145 = scmp.eq.s32.totalorder %s16, 0
    %p146 = por %p144, %p145
    %p147 = scmp.le.s32.totalorder 1, %s10
    %p148 = scmp.lt.s32.totalorder %s10, 57
    %p149 = pnand %p147, %p148
    %p150 = pneg %p149
    // Predicated region
    $region9: #{rnn_net_forward.3} parent=5 // pred_check
      _
    $region10: #{rnn_net_forward.3} parent=5 // pred_check_branch
      %152 = sbr.rel (%p149) target = $region12
    $region11: #{rnn_net_forward.3} parent=5 // pred_region
      %s153 = ssub.s32 %s10, 1
      // Predicated region
      $region13: #{rnn_net_forward.3} parent=11 // pred_check
        %p154 = pneg %p71
      $region14: #{rnn_net_forward.3} parent=11 // pred_check_branch
        %156 = sbr.rel (%p154) target = $region16
      $region15: #{rnn_net_forward.3} parent=11 // pred_region
        _
      $region16: #{rnn_net_forward.3} parent=11 // pred_fallthru
        _
      // Predicated region
      $region17: #{rnn_net_forward.3} parent=11 // pred_check
        %p157 = pneg %p92
      $region18: #{rnn_net_forward.3} parent=11 // pred_check_branch
        %159 = sbr.rel (%p157) target = $region20
      $region19: #{rnn_net_forward.3} parent=11 // pred_region
        _
      $region20: #{rnn_net_forward.3} parent=11 // pred_fallthru
        _
      // Predicated region
      $region21: #{rnn_net_forward.3} parent=11 // pred_check
        %p160 = pneg %p113
      $region22: #{rnn_net_forward.3} parent=11 // pred_check_branch
        %162 = sbr.rel (%p160) target = $region24
      $region23: #{rnn_net_forward.3} parent=11 // pred_region
        _
      $region24: #{rnn_net_forward.3} parent=11 // pred_fallthru
        _
    $region12: #{rnn_net_forward.3} parent=5 // pred_fallthru
      _
    %p163 = scmp.lt.s32.totalorder %s10, 56
    // Predicated region
    $region25: #{rnn_net_forward.3} parent=5 // pred_check
      %p164 = pneg %p163
    $region26: #{rnn_net_forward.3} parent=5 // pred_check_branch
      %166 = sbr.rel (%p164) target = $region28
    $region27: #{rnn_net_forward.3} parent=5 // pred_region
      // Predicated region
      $region29: #{rnn_net_forward.3} parent=27 // pred_check
        %p167 = pneg %p44
      $region30: #{rnn_net_forward.3} parent=27 // pred_check_branch
        %169 = sbr.rel (%p167) target = $region32
      $region31: #{rnn_net_forward.3} parent=27 // pred_region
        %s170 = smul.u32 16, %s17
        %p171 = scmp.lt.s32.totalorder %s18, 27
        %s172 = scalar_select %p171, %s18, 27
        %p173 = scmp.lt.s32.totalorder %s170, 31
        %s174 = scalar_select %p173, %s170, 31
        %s175 = smul.addr %s174, 2
        %s176 = smul.addr %s172, 64
        %s177 = sadd.s32 %s175, %s176
        %s178 = smul.addr %s177, 8
        %s179 = scalar_lea.vmem %s0, %s178
        %s180 = smul.u32 16, %s17
      $region32: #{rnn_net_forward.3} parent=27 // pred_fallthru
        _
    $region28: #{rnn_net_forward.3} parent=5 // pred_fallthru
      _
    %p181 = scmp.le.s32.totalorder 1, %s10
    %p182 = scmp.lt.s32.totalorder %s10, 57
    %p183 = pnand %p181, %p182
    %p184 = pneg %p183
    // Predicated region
    $region33: #{rnn_net_forward.3} parent=5 // pred_check
      _
    $region34: #{rnn_net_forward.3} parent=5 // pred_check_branch
      %186 = sbr.rel (%p183) target = $region36
    $region35: #{rnn_net_forward.3} parent=5 // pred_region
      %s187 = ssub.s32 %s10, 1
      %s188 = smul.u32 16, %s19
      %p189 = scmp.lt.s32.totalorder %s20, 27
      %s190 = scalar_select %p189, %s20, 27
      %p191 = scmp.lt.s32.totalorder %s188, 31
      %s192 = scalar_select %p191, %s188, 31
      %s193 = smul.addr %s192, 2
      %s194 = smul.addr %s190, 64
      %s195 = sadd.s32 %s193, %s194
      %s196 = smul.addr %s195, 8
      %s197 = scalar_lea.vmem %s0, %s196
      %p198 = pneg %p50
      %p199 = pneg %p47
      %p200 = pneg %p71
      %p201 = pneg %p68
      %p202 = pneg %p92
      %p203 = pneg %p89
      %p204 = pneg %p113
      %p205 = pneg %p110
      %p206 = pneg %p139
      %p207 = pneg %p136
      %s208 = smul.u32 16, %s19
      %p209 = scmp.lt.s32.totalorder %s208, 31
      %s210 = scalar_select %p209, %s208, 31
      %s211 = smul.addr %s210, 8
      %s212 = scalar_lea.vmem %s4, %s211
      %s213 = smul.u32 16, %s19
      %p214 = scmp.lt.s32.totalorder %s20, 27
      %s215 = scalar_select %p214, %s20, 27
      %p216 = scmp.lt.s32.totalorder %s213, 31
      %s217 = scalar_select %p216, %s213, 31
      %s218 = smul.addr %s217, 2
      %s219 = smul.addr %s215, 64
      %s220 = sadd.s32 %s218, %s219
      %s221 = smul.addr %s220, 8
      %s222 = scalar_lea.vmem %s0, %s221
      %s223 = smul.u32 16, %s19
      %s224 = smul.u32 16, %s19
      %p225 = scmp.lt.s32.totalorder %s224, 31
      %s226 = scalar_select %p225, %s224, 31
      %s227 = smul.addr %s226, 8
      %s228 = scalar_lea.vmem %s4, %s227
      %s229 = smul.u32 16, %s19
      %p231 = scmp.eq.s32.totalorder %s20, 0
      // Predicated region
      $region37: #{rnn_net_forward.3} parent=35 // pred_check
        %p232 = pneg %p231
      $region38: #{rnn_net_forward.3} parent=35 // pred_check_branch
        %234 = sbr.rel (%p232) target = $region40
      $region39: #{rnn_net_forward.3} parent=35 // pred_region
        %vm235 = vcmask 523264
        %236 = vst.msk [vmem:[#allocation2] sm:$0xff] %vm235, 0.0
        %237 = vst.msk [vmem:[#allocation2 + $0x8] sm:$0xff] %vm235, 0.0
        %238 = vst.msk [vmem:[#allocation2 + $0x10] sm:$0xff] %vm235, 0.0
        %239 = vst.msk [vmem:[#allocation2 + $0x18] sm:$0xff] %vm235, 0.0
        %240 = vst.msk [vmem:[#allocation2 + $0x20] sm:$0xff] %vm235, 0.0
        %241 = vst.msk [vmem:[#allocation2 + $0x28] sm:$0xff] %vm235, 0.0
        %242 = vst.msk [vmem:[#allocation2 + $0x30] sm:$0xff] %vm235, 0.0
        %243 = vst.msk [vmem:[#allocation2 + $0x38] sm:$0xff] %vm235, 0.0
        %244 = vst.msk [vmem:[#allocation2 + $0x40] sm:$0xff] %vm235, 0.0
        %245 = vst.msk [vmem:[#allocation2 + $0x48] sm:$0xff] %vm235, 0.0
        %246 = vst.msk [vmem:[#allocation2 + $0x50] sm:$0xff] %vm235, 0.0
        %247 = vst.msk [vmem:[#allocation2 + $0x58] sm:$0xff] %vm235, 0.0
        %248 = vst.msk [vmem:[#allocation2 + $0x60] sm:$0xff] %vm235, 0.0
        %249 = vst.msk [vmem:[#allocation2 + $0x68] sm:$0xff] %vm235, 0.0
        %250 = vst.msk [vmem:[#allocation2 + $0x70] sm:$0xff] %vm235, 0.0
        %251 = vst.msk [vmem:[#allocation2 + $0x78] sm:$0xff] %vm235, 0.0
        %252 = vst.msk [vmem:[#allocation3] sm:$0xff] %vm235, 0.0
        %253 = vst.msk [vmem:[#allocation3 + $0x8] sm:$0xff] %vm235, 0.0
        %254 = vst.msk [vmem:[#allocation3 + $0x10] sm:$0xff] %vm235, 0.0
        %255 = vst.msk [vmem:[#allocation3 + $0x18] sm:$0xff] %vm235, 0.0
        %256 = vst.msk [vmem:[#allocation3 + $0x20] sm:$0xff] %vm235, 0.0
        %257 = vst.msk [vmem:[#allocation3 + $0x28] sm:$0xff] %vm235, 0.0
        %258 = vst.msk [vmem:[#allocation3 + $0x30] sm:$0xff] %vm235, 0.0
        %259 = vst.msk [vmem:[#allocation3 + $0x38] sm:$0xff] %vm235, 0.0
        %260 = vst.msk [vmem:[#allocation3 + $0x40] sm:$0xff] %vm235, 0.0
        %261 = vst.msk [vmem:[#allocation3 + $0x48] sm:$0xff] %vm235, 0.0
        %262 = vst.msk [vmem:[#allocation3 + $0x50] sm:$0xff] %vm235, 0.0
        %263 = vst.msk [vmem:[#allocation3 + $0x58] sm:$0xff] %vm235, 0.0
        %264 = vst.msk [vmem:[#allocation3 + $0x60] sm:$0xff] %vm235, 0.0
        %265 = vst.msk [vmem:[#allocation3 + $0x68] sm:$0xff] %vm235, 0.0
        %266 = vst.msk [vmem:[#allocation3 + $0x70] sm:$0xff] %vm235, 0.0
        %267 = vst.msk [vmem:[#allocation3 + $0x78] sm:$0xff] %vm235, 0.0
      $region40: #{rnn_net_forward.3} parent=35 // pred_fallthru
        _
      %v268 = vld [vmem:[#allocation2] sm:$0xff]
      %v269 = vld [vmem:[#allocation2 + $0x8] sm:$0xff]
      %v270 = vld [vmem:[#allocation2 + $0x10] sm:$0xff]
      %v271 = vld [vmem:[#allocation2 + $0x18] sm:$0xff]
      %v272 = vld [vmem:[#allocation2 + $0x20] sm:$0xff]
      %v273 = vld [vmem:[#allocation2 + $0x28] sm:$0xff]
      %v274 = vld [vmem:[#allocation2 + $0x30] sm:$0xff]
      %v275 = vld [vmem:[#allocation2 + $0x38] sm:$0xff]
      %v276 = vld [vmem:[#allocation2 + $0x40] sm:$0xff]
      %v277 = vld [vmem:[#allocation2 + $0x48] sm:$0xff]
      %v278 = vld [vmem:[#allocation2 + $0x50] sm:$0xff]
      %v279 = vld [vmem:[#allocation2 + $0x58] sm:$0xff]
      %v280 = vld [vmem:[#allocation2 + $0x60] sm:$0xff]
      %v281 = vld [vmem:[#allocation2 + $0x68] sm:$0xff]
      %v282 = vld [vmem:[#allocation2 + $0x70] sm:$0xff]
      %v283 = vld [vmem:[#allocation2 + $0x78] sm:$0xff]
      %v284 = vld [vmem:[#allocation3] sm:$0xff]
      %v285 = vld [vmem:[#allocation3 + $0x8] sm:$0xff]
      %v286 = vld [vmem:[#allocation3 + $0x10] sm:$0xff]
      %v287 = vld [vmem:[#allocation3 + $0x18] sm:$0xff]
      %v288 = vld [vmem:[#allocation3 + $0x20] sm:$0xff]
      %v289 = vld [vmem:[#allocation3 + $0x28] sm:$0xff]
      %v290 = vld [vmem:[#allocation3 + $0x30] sm:$0xff]
      %v291 = vld [vmem:[#allocation3 + $0x38] sm:$0xff]
      %v292 = vld [vmem:[#allocation3 + $0x40] sm:$0xff]
      %v293 = vld [vmem:[#allocation3 + $0x48] sm:$0xff]
      %v294 = vld [vmem:[#allocation3 + $0x50] sm:$0xff]
      %v295 = vld [vmem:[#allocation3 + $0x58] sm:$0xff]
      %v296 = vld [vmem:[#allocation3 + $0x60] sm:$0xff]
      %v297 = vld [vmem:[#allocation3 + $0x68] sm:$0xff]
      %v298 = vld [vmem:[#allocation3 + $0x70] sm:$0xff]
      %v299 = vld [vmem:[#allocation3 + $0x78] sm:$0xff]
      %v300 = vld [vmem:[%s222] sm:$0xff]
      %v301 = vld [vmem:[%s222 + $0x8] sm:$0xff]
      %v302 = vld [vmem:[%s222 + $0x10] sm:$0xff]
      %v303 = vld [vmem:[%s222 + $0x18] sm:$0xff]
      %v304 = vld [vmem:[%s222 + $0x20] sm:$0xff]
      %v305 = vld [vmem:[%s222 + $0x28] sm:$0xff]
      %v306 = vld [vmem:[%s222 + $0x30] sm:$0xff]
      %v307 = vld [vmem:[%s222 + $0x38] sm:$0xff]
      %v308 = vld [vmem:[%s222 + $0x40] sm:$0xff]
      %v309 = vld [vmem:[%s222 + $0x48] sm:$0xff]
      %v310 = vld [vmem:[%s222 + $0x50] sm:$0xff]
      %v311 = vld [vmem:[%s222 + $0x58] sm:$0xff]
      %v312 = vld [vmem:[%s222 + $0x60] sm:$0xff]
      %v313 = vld [vmem:[%s222 + $0x68] sm:$0xff]
      %v314 = vld [vmem:[%s222 + $0x70] sm:$0xff]
      %v315 = vld [vmem:[%s222 + $0x78] sm:$0xff]
      %v316 = vld [vmem:[%s222 + $0x80] sm:$0xff]
      %v317 = vld [vmem:[%s222 + $0x88] sm:$0xff]
      %v318 = vld [vmem:[%s222 + $0x90] sm:$0xff]
      %v319 = vld [vmem:[%s222 + $0x98] sm:$0xff]
      %v320 = vld [vmem:[%s222 + $0xa0] sm:$0xff]
      %v321 = vld [vmem:[%s222 + $0xa8] sm:$0xff]
      %v322 = vld [vmem:[%s222 + $0xb0] sm:$0xff]
      %v323 = vld [vmem:[%s222 + $0xb8] sm:$0xff]
      %v324 = vld [vmem:[%s222 + $0xc0] sm:$0xff]
      %v325 = vld [vmem:[%s222 + $0xc8] sm:$0xff]
      %v326 = vld [vmem:[%s222 + $0xd0] sm:$0xff]
      %v327 = vld [vmem:[%s222 + $0xd8] sm:$0xff]
      %v328 = vld [vmem:[%s222 + $0xe0] sm:$0xff]
      %v329 = vld [vmem:[%s222 + $0xe8] sm:$0xff]
      %v330 = vld [vmem:[%s222 + $0xf0] sm:$0xff]
      %v331 = vld [vmem:[%s222 + $0xf8] sm:$0xff]
      %v332 = vpack.c.bf16 %v269, %v268
      %v333 = vpack.c.bf16 %v271, %v270
      %v334 = vpack.c.bf16 %v273, %v272
      %v335 = vpack.c.bf16 %v275, %v274
      %v336 = vpack.c.bf16 %v277, %v276
      %v337 = vpack.c.bf16 %v279, %v278
      %v338 = vpack.c.bf16 %v281, %v280
      %v339 = vpack.c.bf16 %v283, %v282
      %v340 = vld [vmem:[%s1] sm:$0xff]
      %v341 = vld [vmem:[%s1 + $0x8] sm:$0xff]
      %v342 = vld [vmem:[%s1 + $0x10] sm:$0xff]
      %v343 = vld [vmem:[%s1 + $0x18] sm:$0xff]
      %v344 = vld [vmem:[%s1 + $0x20] sm:$0xff]
      %v345 = vld [vmem:[%s1 + $0x28] sm:$0xff]
      %v346 = vld [vmem:[%s1 + $0x30] sm:$0xff]
      %v347 = vld [vmem:[%s1 + $0x38] sm:$0xff]
      %v356 = vunpack.c.l.b16 %v340
      %v357 = vunpack.c.h.b16 %v340
      %v358 = vunpack.c.l.b16 %v341
      %v359 = vunpack.c.h.b16 %v341
      %v360 = vunpack.c.l.b16 %v342
      %v361 = vunpack.c.h.b16 %v342
      %v362 = vunpack.c.l.b16 %v343
      %v363 = vunpack.c.h.b16 %v343
      %v364 = vunpack.c.l.b16 %v344
      %v365 = vunpack.c.h.b16 %v344
      %v366 = vunpack.c.l.b16 %v345
      %v367 = vunpack.c.h.b16 %v345
      %v368 = vunpack.c.l.b16 %v346
      %v369 = vunpack.c.h.b16 %v346
      %v370 = vunpack.c.l.b16 %v347
      %v371 = vunpack.c.h.b16 %v347
      %v372 = vpack.c.b16 %v358, %v356
      %v373 = vpack.c.b16 %v359, %v357
      %v374 = vpack.c.b16 %v362, %v360
      %v375 = vpack.c.b16 %v363, %v361
      %v376 = vpack.c.b16 %v366, %v364
      %v377 = vpack.c.b16 %v367, %v365
      %v378 = vpack.c.b16 %v370, %v368
      %v379 = vpack.c.b16 %v371, %v369
      %vm388 = vcmask 523264
      %v390 = vsel %vm388, %v332, 0
      %v393 = vsel %vm388, %v333, 0
      %v396 = vsel %vm388, %v334, 0
      %v399 = vsel %vm388, %v335, 0
      %v402 = vsel %vm388, %v336, 0
      %v405 = vsel %vm388, %v337, 0
      %v408 = vsel %vm388, %v338, 0
      %v411 = vsel %vm388, %v339, 0
      %413 = vmatprep.subr.bf16.mxu0 %v373
      %414 = vmatpush1.bf16.msra.mxu0 %v372
      %415 = vmatprep.subr.bf16.mxu0 %v375
      %416 = vmatpush1.bf16.msra.mxu0 %v374
      %417 = vmatprep.subr.bf16.mxu0 %v377
      %418 = vmatpush1.bf16.msra.mxu0 %v376
      %419 = vmatprep.subr.bf16.mxu0 %v379
      %420 = vmatpush1.bf16.msra.mxu0 %v378
      %421 = vmatprep.subr.bf16.mxu0 0
      %422 = vmatpush1.bf16.msra.mxu0 0
      %423 = vmatprep.subr.bf16.mxu0 0
      %424 = vmatpush1.bf16.msra.mxu0 0
      %425 = vmatprep.subr.bf16.mxu0 0
      %426 = vmatpush1.bf16.msra.mxu0 0
      %427 = vmatprep.subr.bf16.mxu0 0
      %428 = vmatpush1.bf16.msra.mxu0 0
      %429 = vmatprep.subr.bf16.mxu0 0
      %430 = vmatpush1.bf16.msra.mxu0 0
      %431 = vmatprep.subr.bf16.mxu0 0
      %432 = vmatpush1.bf16.msra.mxu0 0
      %433 = vmatprep.subr.bf16.mxu0 0
      %434 = vmatpush1.bf16.msra.mxu0 0
      %435 = vmatprep.subr.bf16.mxu0 0
      %436 = vmatpush1.bf16.msra.mxu0 0
      %437 = vmatprep.subr.bf16.mxu0 0
      %438 = vmatpush1.bf16.msra.mxu0 0
      %439 = vmatprep.subr.bf16.mxu0 0
      %440 = vmatpush1.bf16.msra.mxu0 0
      %441 = vmatprep.subr.bf16.mxu0 0
      %442 = vmatpush1.bf16.msra.mxu0 0
      %443 = vmatprep.subr.bf16.mxu0 0
      %444 = vmatpush1.bf16.msra.mxu0 0
      %445 = vmatprep.mubr.bf16.mxu0 0
      %446 = vmatmul.mubr.bf16.gmra.mrb[0].mxu0 %v390
      %v447 = vpop.f32.mrb[0].mxu0
      %v448 = vadd.f32 0.0, %v447
      %v449 = vpop.f32.mrb[0].mxu0
      %v450 = vadd.f32 0.0, %v449
      %v451 = vpop.f32.mrb[0].mxu0
      %v452 = vadd.f32 0.0, %v451
      %v453 = vpop.f32.mrb[0].mxu0
      %v454 = vadd.f32 0.0, %v453
      %455 = vmatprep.mubr.bf16.mxu0 0
      %456 = vmatmul.mubr.bf16.gmra.mrb[0].mxu0 %v393
      %v457 = vpop.f32.mrb[0].mxu0
      %v458 = vadd.f32 0.0, %v457
      %v459 = vpop.f32.mrb[0].mxu0
      %v460 = vadd.f32 0.0, %v459
      %v461 = vpop.f32.mrb[0].mxu0
      %v462 = vadd.f32 0.0, %v461
      %v463 = vpop.f32.mrb[0].mxu0
      %v464 = vadd.f32 0.0, %v463
      %465 = vmatprep.mubr.bf16.mxu0 0
      %466 = vmatmul.mubr.bf16.gmra.mrb[0].mxu0 %v396
      %v467 = vpop.f32.mrb[0].mxu0
      %v468 = vadd.f32 0.0, %v467
      %v469 = vpop.f32.mrb[0].mxu0
      %v470 = vadd.f32 0.0, %v469
      %v471 = vpop.f32.mrb[0].mxu0
      %v472 = vadd.f32 0.0, %v471
      %v473 = vpop.f32.mrb[0].mxu0
      %v474 = vadd.f32 0.0, %v473
      %475 = vmatprep.mubr.bf16.mxu0 0
      %476 = vmatmul.mubr.bf16.gmra.mrb[0].mxu0 %v399
      %v477 = vpop.f32.mrb[0].mxu0
      %v478 = vadd.f32 0.0, %v477
      %v479 = vpop.f32.mrb[0].mxu0
      %v480 = vadd.f32 0.0, %v479
      %v481 = vpop.f32.mrb[0].mxu0
      %v482 = vadd.f32 0.0, %v481
      %v483 = vpop.f32.mrb[0].mxu0
      %v484 = vadd.f32 0.0, %v483
      %485 = vmatprep.mubr.bf16.mxu0 0
      %486 = vmatmul.mubr.bf16.gmra.mrb[0].mxu0 %v402
      %v487 = vpop.f32.mrb[0].mxu0
      %v488 = vadd.f32 0.0, %v487
      %v489 = vpop.f32.mrb[0].mxu0
      %v490 = vadd.f32 0.0, %v489
      %v491 = vpop.f32.mrb[0].mxu0
      %v492 = vadd.f32 0.0, %v491
      %v493 = vpop.f32.mrb[0].mxu0
      %v494 = vadd.f32 0.0, %v493
      %495 = vmatprep.mubr.bf16.mxu0 0
      %496 = vmatmul.mubr.bf16.gmra.mrb[0].mxu0 %v405
      %v497 = vpop.f32.mrb[0].mxu0
      %v498 = vadd.f32 0.0, %v497
      %v499 = vpop.f32.mrb[0].mxu0
      %v500 = vadd.f32 0.0, %v499
      %v501 = vpop.f32.mrb[0].mxu0
      %v502 = vadd.f32 0.0, %v501
      %v503 = vpop.f32.mrb[0].mxu0
      %v504 = vadd.f32 0.0, %v503
      %505 = vmatprep.mubr.bf16.mxu0 0
      %506 = vmatmul.mubr.bf16.gmra.mrb[0].mxu0 %v408
      %v507 = vpop.f32.mrb[0].mxu0
      %v508 = vadd.f32 0.0, %v507
      %v509 = vpop.f32.mrb[0].mxu0
      %v510 = vadd.f32 0.0, %v509
      %v511 = vpop.f32.mrb[0].mxu0
      %v512 = vadd.f32 0.0, %v511
      %v513 = vpop.f32.mrb[0].mxu0
      %v514 = vadd.f32 0.0, %v513
      %515 = vmatprep.mubr.bf16.mxu0 0
      %516 = vmatmul.mubr.bf16.gmra.mrb[0].mxu0 %v411
      %v517 = vpop.f32.mrb[0].mxu0
      %v518 = vadd.f32 0.0, %v517
      %v519 = vpop.f32.mrb[0].mxu0
      %v520 = vadd.f32 0.0, %v519
      %v521 = vpop.f32.mrb[0].mxu0
      %v522 = vadd.f32 0.0, %v521
      %v523 = vpop.f32.mrb[0].mxu0
      %v524 = vadd.f32 0.0, %v523
      %525 = vdwg.mxu0
      %v526 = vadd.f32 %v300, %v448
      %v527 = vadd.f32 %v301, %v450
      %v528 = vadd.f32 %v302, %v452
      %v529 = vadd.f32 %v303, %v454
      %v530 = vadd.f32 %v304, %v458
      %v531 = vadd.f32 %v305, %v460
      %v532 = vadd.f32 %v306, %v462
      %v533 = vadd.f32 %v307, %v464
      %v534 = vadd.f32 %v308, %v468
      %v535 = vadd.f32 %v309, %v470
      %v536 = vadd.f32 %v310, %v472
      %v537 = vadd.f32 %v311, %v474
      %v538 = vadd.f32 %v312, %v478
      %v539 = vadd.f32 %v313, %v480
      %v540 = vadd.f32 %v314, %v482
      %v541 = vadd.f32 %v315, %v484
      %v542 = vadd.f32 %v316, %v488
      %v543 = vadd.f32 %v317, %v490
      %v544 = vadd.f32 %v318, %v492
      %v545 = vadd.f32 %v319, %v494
      %v546 = vadd.f32 %v320, %v498
      %v547 = vadd.f32 %v321, %v500
      %v548 = vadd.f32 %v322, %v502
      %v549 = vadd.f32 %v323, %v504
      %v550 = vadd.f32 %v324, %v508
      %v551 = vadd.f32 %v325, %v510
      %v552 = vadd.f32 %v326, %v512
      %v553 = vadd.f32 %v327, %v514
      %v554 = vadd.f32 %v328, %v518
      %v555 = vadd.f32 %v329, %v520
      %v556 = vadd.f32 %v330, %v522
      %v557 = vadd.f32 %v331, %v524
      %v558 = vxor.u32 %v526, 2147483648
      %v559 = vxor.u32 %v527, 2147483648
      %v560 = vxor.u32 %v528, 2147483648
      %v561 = vxor.u32 %v529, 2147483648
      %v562 = vxor.u32 %v530, 2147483648
      %v563 = vxor.u32 %v531, 2147483648
      %v564 = vxor.u32 %v532, 2147483648
      %v565 = vxor.u32 %v533, 2147483648
      %v566 = vxor.u32 %v534, 2147483648
      %v567 = vxor.u32 %v535, 2147483648
      %v568 = vxor.u32 %v536, 2147483648
      %v569 = vxor.u32 %v537, 2147483648
      %v570 = vxor.u32 %v538, 2147483648
      %v571 = vxor.u32 %v539, 2147483648
      %v572 = vxor.u32 %v540, 2147483648
      %v573 = vxor.u32 %v541, 2147483648
      %v574 = vxor.u32 %v542, 2147483648
      %v575 = vxor.u32 %v543, 2147483648
      %v576 = vxor.u32 %v544, 2147483648
      %v577 = vxor.u32 %v545, 2147483648
      %v578 = vxor.u32 %v546, 2147483648
      %v579 = vxor.u32 %v547, 2147483648
      %v580 = vxor.u32 %v548, 2147483648
      %v581 = vxor.u32 %v549, 2147483648
      %v582 = vxor.u32 %v550, 2147483648
      %v583 = vxor.u32 %v551, 2147483648
      %v584 = vxor.u32 %v552, 2147483648
      %v585 = vxor.u32 %v553, 2147483648
      %v586 = vxor.u32 %v554, 2147483648
      %v587 = vxor.u32 %v555, 2147483648
      %v588 = vxor.u32 %v556, 2147483648
      %v589 = vxor.u32 %v557, 2147483648
      %v590 = vmul.f32 %v558, 1.442695
      %v591 = vpow.pop %v590
      %v592 = vmul.f32 %v559, 1.442695
      %v593 = vpow.pop %v592
      %v594 = vmul.f32 %v560, 1.442695
      %v595 = vpow.pop %v594
      %v596 = vmul.f32 %v561, 1.442695
      %v597 = vpow.pop %v596
      %v598 = vmul.f32 %v562, 1.442695
      %v599 = vpow.pop %v598
      %v600 = vmul.f32 %v563, 1.442695
      %v601 = vpow.pop %v600
      %v602 = vmul.f32 %v564, 1.442695
      %v603 = vpow.pop %v602
      %v604 = vmul.f32 %v565, 1.442695
      %v605 = vpow.pop %v604
      %v606 = vmul.f32 %v566, 1.442695
      %v607 = vpow.pop %v606
      %v608 = vmul.f32 %v567, 1.442695
      %v609 = vpow.pop %v608
      %v610 = vmul.f32 %v568, 1.442695
      %v611 = vpow.pop %v610
      %v612 = vmul.f32 %v569, 1.442695
      %v613 = vpow.pop %v612
      %v614 = vmul.f32 %v570, 1.442695
      %v615 = vpow.pop %v614
      %v616 = vmul.f32 %v571, 1.442695
      %v617 = vpow.pop %v616
      %v618 = vmul.f32 %v572, 1.442695
      %v619 = vpow.pop %v618
      %v620 = vmul.f32 %v573, 1.442695
      %v621 = vpow.pop %v620
      %v622 = vmul.f32 %v574, 1.442695
      %v623 = vpow.pop %v622
      %v624 = vmul.f32 %v575, 1.442695
      %v625 = vpow.pop %v624
      %v626 = vmul.f32 %v576, 1.442695
      %v627 = vpow.pop %v626
      %v628 = vmul.f32 %v577, 1.442695
      %v629 = vpow.pop %v628
      %v630 = vmul.f32 %v578, 1.442695
      %v631 = vpow.pop %v630
      %v632 = vmul.f32 %v579, 1.442695
      %v633 = vpow.pop %v632
      %v634 = vmul.f32 %v580, 1.442695
      %v635 = vpow.pop %v634
      %v636 = vmul.f32 %v581, 1.442695
      %v637 = vpow.pop %v636
      %v638 = vmul.f32 %v582, 1.442695
      %v639 = vpow.pop %v638
      %v640 = vmul.f32 %v583, 1.442695
      %v641 = vpow.pop %v640
      %v642 = vmul.f32 %v584, 1.442695
      %v643 = vpow.pop %v642
      %v644 = vmul.f32 %v585, 1.442695
      %v645 = vpow.pop %v644
      %v646 = vmul.f32 %v586, 1.442695
      %v647 = vpow.pop %v646
      %v648 = vmul.f32 %v587, 1.442695
      %v649 = vpow.pop %v648
      %v650 = vmul.f32 %v588, 1.442695
      %v651 = vpow.pop %v650
      %v652 = vmul.f32 %v589, 1.442695
      %v653 = vpow.pop %v652
      %v654 = vadd.f32 %v591, 1.0
      %v655 = vadd.f32 %v593, 1.0
      %v656 = vadd.f32 %v595, 1.0
      %v657 = vadd.f32 %v597, 1.0
      %v658 = vadd.f32 %v599, 1.0
      %v659 = vadd.f32 %v601, 1.0
      %v660 = vadd.f32 %v603, 1.0
      %v661 = vadd.f32 %v605, 1.0
      %v662 = vadd.f32 %v607, 1.0
      %v663 = vadd.f32 %v609, 1.0
      %v664 = vadd.f32 %v611, 1.0
      %v665 = vadd.f32 %v613, 1.0
      %v666 = vadd.f32 %v615, 1.0
      %v667 = vadd.f32 %v617, 1.0
      %v668 = vadd.f32 %v619, 1.0
      %v669 = vadd.f32 %v621, 1.0
      %v670 = vadd.f32 %v623, 1.0
      %v671 = vadd.f32 %v625, 1.0
      %v672 = vadd.f32 %v627, 1.0
      %v673 = vadd.f32 %v629, 1.0
      %v674 = vadd.f32 %v631, 1.0
      %v675 = vadd.f32 %v633, 1.0
      %v676 = vadd.f32 %v635, 1.0
      %v677 = vadd.f32 %v637, 1.0
      %v678 = vadd.f32 %v639, 1.0
      %v679 = vadd.f32 %v641, 1.0
      %v680 = vadd.f32 %v643, 1.0
      %v681 = vadd.f32 %v645, 1.0
      %v682 = vadd.f32 %v647, 1.0
      %v683 = vadd.f32 %v649, 1.0
      %v684 = vadd.f32 %v651, 1.0
      %v685 = vadd.f32 %v653, 1.0
      %v686 = vrcp.pop %v654
      %v687 = vmul.f32 1.0, %v686
      %v688 = vrcp.pop %v655
      %v689 = vmul.f32 1.0, %v688
      %v690 = vrcp.pop %v656
      %v691 = vmul.f32 1.0, %v690
      %v692 = vrcp.pop %v657
      %v693 = vmul.f32 1.0, %v692
      %v694 = vrcp.pop %v658
      %v695 = vmul.f32 1.0, %v694
      %v696 = vrcp.pop %v659
      %v697 = vmul.f32 1.0, %v696
      %v698 = vrcp.pop %v660
      %v699 = vmul.f32 1.0, %v698
      %v700 = vrcp.pop %v661
      %v701 = vmul.f32 1.0, %v700
      %v702 = vrcp.pop %v662
      %v703 = vmul.f32 1.0, %v702
      %v704 = vrcp.pop %v663
      %v705 = vmul.f32 1.0, %v704
      %v706 = vrcp.pop %v664
      %v707 = vmul.f32 1.0, %v706
      %v708 = vrcp.pop %v665
      %v709 = vmul.f32 1.0, %v708
      %v710 = vrcp.pop %v666
      %v711 = vmul.f32 1.0, %v710
      %v712 = vrcp.pop %v667
      %v713 = vmul.f32 1.0, %v712
      %v714 = vrcp.pop %v668
      %v715 = vmul.f32 1.0, %v714
      %v716 = vrcp.pop %v669
      %v717 = vmul.f32 1.0, %v716
      %v718 = vrcp.pop %v670
      %v719 = vmul.f32 1.0, %v718
      %v720 = vrcp.pop %v671
      %v721 = vmul.f32 1.0, %v720
      %v722 = vrcp.pop %v672
      %v723 = vmul.f32 1.0, %v722
      %v724 = vrcp.pop %v673
      %v725 = vmul.f32 1.0, %v724
      %v726 = vrcp.pop %v674
      %v727 = vmul.f32 1.0, %v726
      %v728 = vrcp.pop %v675
      %v729 = vmul.f32 1.0, %v728
      %v730 = vrcp.pop %v676
      %v731 = vmul.f32 1.0, %v730
      %v732 = vrcp.pop %v677
      %v733 = vmul.f32 1.0, %v732
      %v734 = vrcp.pop %v678
      %v735 = vmul.f32 1.0, %v734
      %v736 = vrcp.pop %v679
      %v737 = vmul.f32 1.0, %v736
      %v738 = vrcp.pop %v680
      %v739 = vmul.f32 1.0, %v738
      %v740 = vrcp.pop %v681
      %v741 = vmul.f32 1.0, %v740
      %v742 = vrcp.pop %v682
      %v743 = vmul.f32 1.0, %v742
      %v744 = vrcp.pop %v683
      %v745 = vmul.f32 1.0, %v744
      %v746 = vrcp.pop %v684
      %v747 = vmul.f32 1.0, %v746
      %v748 = vrcp.pop %v685
      %v749 = vmul.f32 1.0, %v748
      %v750 = vtanh.pop %v527
      %v751 = vtanh.pop %v529
      %v752 = vtanh.pop %v531
      %v753 = vtanh.pop %v533
      %v754 = vtanh.pop %v535
      %v755 = vtanh.pop %v537
      %v756 = vtanh.pop %v539
      %v757 = vtanh.pop %v541
      %v758 = vtanh.pop %v543
      %v759 = vtanh.pop %v545
      %v760 = vtanh.pop %v547
      %v761 = vtanh.pop %v549
      %v762 = vtanh.pop %v551
      %v763 = vtanh.pop %v553
      %v764 = vtanh.pop %v555
      %v765 = vtanh.pop %v557
      %782 = vrot.lane.b32.xlu0 %v284, 64
      %v783 = vpop.permute.xlu0 %782
      %784 = vrot.lane.b32.xlu0 %v285, 64
      %v785 = vpop.permute.xlu0 %784
      %786 = vrot.lane.b32.xlu0 %v286, 64
      %v787 = vpop.permute.xlu0 %786
      %788 = vrot.lane.b32.xlu0 %v287, 64
      %v789 = vpop.permute.xlu0 %788
      %790 = vrot.lane.b32.xlu0 %v288, 64
      %v791 = vpop.permute.xlu0 %790
      %792 = vrot.lane.b32.xlu0 %v289, 64
      %v793 = vpop.permute.xlu0 %792
      %794 = vrot.lane.b32.xlu0 %v290, 64
      %v795 = vpop.permute.xlu0 %794
      %796 = vrot.lane.b32.xlu0 %v291, 64
      %v797 = vpop.permute.xlu0 %796
      %798 = vrot.lane.b32.xlu0 %v292, 64
      %v799 = vpop.permute.xlu0 %798
      %800 = vrot.lane.b32.xlu0 %v293, 64
      %v801 = vpop.permute.xlu0 %800
      %802 = vrot.lane.b32.xlu0 %v294, 64
      %v803 = vpop.permute.xlu0 %802
      %804 = vrot.lane.b32.xlu0 %v295, 64
      %v805 = vpop.permute.xlu0 %804
      %806 = vrot.lane.b32.xlu0 %v296, 64
      %v807 = vpop.permute.xlu0 %806
      %808 = vrot.lane.b32.xlu0 %v297, 64
      %v809 = vpop.permute.xlu0 %808
      %810 = vrot.lane.b32.xlu0 %v298, 64
      %v811 = vpop.permute.xlu0 %810
      %812 = vrot.lane.b32.xlu0 %v299, 64
      %v813 = vpop.permute.xlu0 %812
      %v830 = vmul.f32 %v687, %v783
      %v831 = vmul.f32 %v691, %v785
      %v832 = vmul.f32 %v695, %v787
      %v833 = vmul.f32 %v699, %v789
      %v834 = vmul.f32 %v703, %v791
      %v835 = vmul.f32 %v707, %v793
      %v836 = vmul.f32 %v711, %v795
      %v837 = vmul.f32 %v715, %v797
      %v838 = vmul.f32 %v719, %v799
      %v839 = vmul.f32 %v723, %v801
      %v840 = vmul.f32 %v727, %v803
      %v841 = vmul.f32 %v731, %v805
      %v842 = vmul.f32 %v735, %v807
      %v843 = vmul.f32 %v739, %v809
      %v844 = vmul.f32 %v743, %v811
      %v845 = vmul.f32 %v747, %v813
      %862 = vrot.lane.b32.xlu0 %v750, 64
      %v863 = vpop.permute.xlu0 %862
      %864 = vrot.lane.b32.xlu0 %v751, 64
      %v865 = vpop.permute.xlu0 %864
      %866 = vrot.lane.b32.xlu0 %v752, 64
      %v867 = vpop.permute.xlu0 %866
      %868 = vrot.lane.b32.xlu0 %v753, 64
      %v869 = vpop.permute.xlu0 %868
      %870 = vrot.lane.b32.xlu0 %v754, 64
      %v871 = vpop.permute.xlu0 %870
      %872 = vrot.lane.b32.xlu0 %v755, 64
      %v873 = vpop.permute.xlu0 %872
      %874 = vrot.lane.b32.xlu0 %v756, 64
      %v875 = vpop.permute.xlu0 %874
      %876 = vrot.lane.b32.xlu0 %v757, 64
      %v877 = vpop.permute.xlu0 %876
      %878 = vrot.lane.b32.xlu0 %v758, 64
      %v879 = vpop.permute.xlu0 %878
      %880 = vrot.lane.b32.xlu0 %v759, 64
      %v881 = vpop.permute.xlu0 %880
      %882 = vrot.lane.b32.xlu0 %v760, 64
      %v883 = vpop.permute.xlu0 %882
      %884 = vrot.lane.b32.xlu0 %v761, 64
      %v885 = vpop.permute.xlu0 %884
      %886 = vrot.lane.b32.xlu0 %v762, 64
      %v887 = vpop.permute.xlu0 %886
      %888 = vrot.lane.b32.xlu0 %v763, 64
      %v889 = vpop.permute.xlu0 %888
      %890 = vrot.lane.b32.xlu0 %v764, 64
      %v891 = vpop.permute.xlu0 %890
      %892 = vrot.lane.b32.xlu0 %v765, 64
      %v893 = vpop.permute.xlu0 %892
      %v910 = vmul.f32 %v687, %v863
      %v911 = vmul.f32 %v691, %v865
      %v912 = vmul.f32 %v695, %v867
      %v913 = vmul.f32 %v699, %v869
      %v914 = vmul.f32 %v703, %v871
      %v915 = vmul.f32 %v707, %v873
      %v916 = vmul.f32 %v711, %v875
      %v917 = vmul.f32 %v715, %v877
      %v918 = vmul.f32 %v719, %v879
      %v919 = vmul.f32 %v723, %v881
      %v920 = vmul.f32 %v727, %v883
      %v921 = vmul.f32 %v731, %v885
      %v922 = vmul.f32 %v735, %v887
      %v923 = vmul.f32 %v739, %v889
      %v924 = vmul.f32 %v743, %v891
      %v925 = vmul.f32 %v747, %v893
      %942 = vrot.lane.b32.xlu0 %v910, 64
      %v943 = vpop.permute.xlu0 %942
      %944 = vrot.lane.b32.xlu0 %v911, 64
      %v945 = vpop.permute.xlu0 %944
      %946 = vrot.lane.b32.xlu0 %v912, 64
      %v947 = vpop.permute.xlu0 %946
      %948 = vrot.lane.b32.xlu0 %v913, 64
      %v949 = vpop.permute.xlu0 %948
      %950 = vrot.lane.b32.xlu0 %v914, 64
      %v951 = vpop.permute.xlu0 %950
      %952 = vrot.lane.b32.xlu0 %v915, 64
      %v953 = vpop.permute.xlu0 %952
      %954 = vrot.lane.b32.xlu0 %v916, 64
      %v955 = vpop.permute.xlu0 %954
      %956 = vrot.lane.b32.xlu0 %v917, 64
      %v957 = vpop.permute.xlu0 %956
      %958 = vrot.lane.b32.xlu0 %v918, 64
      %v959 = vpop.permute.xlu0 %958
      %960 = vrot.lane.b32.xlu0 %v919, 64
      %v961 = vpop.permute.xlu0 %960
      %962 = vrot.lane.b32.xlu0 %v920, 64
      %v963 = vpop.permute.xlu0 %962
      %964 = vrot.lane.b32.xlu0 %v921, 64
      %v965 = vpop.permute.xlu0 %964
      %966 = vrot.lane.b32.xlu0 %v922, 64
      %v967 = vpop.permute.xlu0 %966
      %968 = vrot.lane.b32.xlu0 %v923, 64
      %v969 = vpop.permute.xlu0 %968
      %970 = vrot.lane.b32.xlu0 %v924, 64
      %v971 = vpop.permute.xlu0 %970
      %972 = vrot.lane.b32.xlu0 %v925, 64
      %v973 = vpop.permute.xlu0 %972
      %v990 = vadd.f32 %v830, %v943
      %v991 = vadd.f32 %v831, %v945
      %v992 = vadd.f32 %v832, %v947
      %v993 = vadd.f32 %v833, %v949
      %v994 = vadd.f32 %v834, %v951
      %v995 = vadd.f32 %v835, %v953
      %v996 = vadd.f32 %v836, %v955
      %v997 = vadd.f32 %v837, %v957
      %v998 = vadd.f32 %v838, %v959
      %v999 = vadd.f32 %v839, %v961
      %v1000 = vadd.f32 %v840, %v963
      %v1001 = vadd.f32 %v841, %v965
      %v1002 = vadd.f32 %v842, %v967
      %v1003 = vadd.f32 %v843, %v969
      %v1004 = vadd.f32 %v844, %v971
      %v1005 = vadd.f32 %v845, %v973
      %v1006 = vtanh.pop %v990
      %v1007 = vtanh.pop %v991
      %v1008 = vtanh.pop %v992
      %v1009 = vtanh.pop %v993
      %v1010 = vtanh.pop %v994
      %v1011 = vtanh.pop %v995
      %v1012 = vtanh.pop %v996
      %v1013 = vtanh.pop %v997
      %v1014 = vtanh.pop %v998
      %v1015 = vtanh.pop %v999
      %v1016 = vtanh.pop %v1000
      %v1017 = vtanh.pop %v1001
      %v1018 = vtanh.pop %v1002
      %v1019 = vtanh.pop %v1003
      %v1020 = vtanh.pop %v1004
      %v1021 = vtanh.pop %v1005
      %1038 = vrot.lane.b32.xlu0 %v1006, 64
      %v1039 = vpop.permute.xlu0 %1038
      %1040 = vrot.lane.b32.xlu0 %v1007, 64
      %v1041 = vpop.permute.xlu0 %1040
      %1042 = vrot.lane.b32.xlu0 %v1008, 64
      %v1043 = vpop.permute.xlu0 %1042
      %1044 = vrot.lane.b32.xlu0 %v1009, 64
      %v1045 = vpop.permute.xlu0 %1044
      %1046 = vrot.lane.b32.xlu0 %v1010, 64
      %v1047 = vpop.permute.xlu0 %1046
      %1048 = vrot.lane.b32.xlu0 %v1011, 64
      %v1049 = vpop.permute.xlu0 %1048
      %1050 = vrot.lane.b32.xlu0 %v1012, 64
      %v1051 = vpop.permute.xlu0 %1050
      %1052 = vrot.lane.b32.xlu0 %v1013, 64
      %v1053 = vpop.permute.xlu0 %1052
      %1054 = vrot.lane.b32.xlu0 %v1014, 64
      %v1055 = vpop.permute.xlu0 %1054
      %1056 = vrot.lane.b32.xlu0 %v1015, 64
      %v1057 = vpop.permute.xlu0 %1056
      %1058 = vrot.lane.b32.xlu0 %v1016, 64
      %v1059 = vpop.permute.xlu0 %1058
      %1060 = vrot.lane.b32.xlu0 %v1017, 64
      %v1061 = vpop.permute.xlu0 %1060
      %1062 = vrot.lane.b32.xlu0 %v1018, 64
      %v1063 = vpop.permute.xlu0 %1062
      %1064 = vrot.lane.b32.xlu0 %v1019, 64
      %v1065 = vpop.permute.xlu0 %1064
      %1066 = vrot.lane.b32.xlu0 %v1020, 64
      %v1067 = vpop.permute.xlu0 %1066
      %1068 = vrot.lane.b32.xlu0 %v1021, 64
      %v1069 = vpop.permute.xlu0 %1068
      %v1086 = vmul.f32 %v689, %v1039
      %v1087 = vmul.f32 %v693, %v1041
      %v1088 = vmul.f32 %v697, %v1043
      %v1089 = vmul.f32 %v701, %v1045
      %v1090 = vmul.f32 %v705, %v1047
      %v1091 = vmul.f32 %v709, %v1049
      %v1092 = vmul.f32 %v713, %v1051
      %v1093 = vmul.f32 %v717, %v1053
      %v1094 = vmul.f32 %v721, %v1055
      %v1095 = vmul.f32 %v725, %v1057
      %v1096 = vmul.f32 %v729, %v1059
      %v1097 = vmul.f32 %v733, %v1061
      %v1098 = vmul.f32 %v737, %v1063
      %v1099 = vmul.f32 %v741, %v1065
      %v1100 = vmul.f32 %v745, %v1067
      %v1101 = vmul.f32 %v749, %v1069
      %1118 = vrot.lane.b32.xlu0 %v990, 64
      %v1119 = vpop.permute.xlu0 %1118
      %1120 = vrot.lane.b32.xlu0 %v991, 64
      %v1121 = vpop.permute.xlu0 %1120
      %1122 = vrot.lane.b32.xlu0 %v992, 64
      %v1123 = vpop.permute.xlu0 %1122
      %1124 = vrot.lane.b32.xlu0 %v993, 64
      %v1125 = vpop.permute.xlu0 %1124
      %1126 = vrot.lane.b32.xlu0 %v994, 64
      %v1127 = vpop.permute.xlu0 %1126
      %1128 = vrot.lane.b32.xlu0 %v995, 64
      %v1129 = vpop.permute.xlu0 %1128
      %1130 = vrot.lane.b32.xlu0 %v996, 64
      %v1131 = vpop.permute.xlu0 %1130
      %1132 = vrot.lane.b32.xlu0 %v997, 64
      %v1133 = vpop.permute.xlu0 %1132
      %1134 = vrot.lane.b32.xlu0 %v998, 64
      %v1135 = vpop.permute.xlu0 %1134
      %1136 = vrot.lane.b32.xlu0 %v999, 64
      %v1137 = vpop.permute.xlu0 %1136
      %1138 = vrot.lane.b32.xlu0 %v1000, 64
      %v1139 = vpop.permute.xlu0 %1138
      %1140 = vrot.lane.b32.xlu0 %v1001, 64
      %v1141 = vpop.permute.xlu0 %1140
      %1142 = vrot.lane.b32.xlu0 %v1002, 64
      %v1143 = vpop.permute.xlu0 %1142
      %1144 = vrot.lane.b32.xlu0 %v1003, 64
      %v1145 = vpop.permute.xlu0 %1144
      %1146 = vrot.lane.b32.xlu0 %v1004, 64
      %v1147 = vpop.permute.xlu0 %1146
      %1148 = vrot.lane.b32.xlu0 %v1005, 64
      %v1149 = vpop.permute.xlu0 %1148
      %1166 = vst.msk [vmem:[#allocation3] sm:$0xff] %vm388, %v1119
      %1167 = vst.msk [vmem:[#allocation3 + $0x8] sm:$0xff] %vm388, %v1121
      %1168 = vst.msk [vmem:[#allocation3 + $0x10] sm:$0xff] %vm388, %v1123
      %1169 = vst.msk [vmem:[#allocation3 + $0x18] sm:$0xff] %vm388, %v1125
      %1170 = vst.msk [vmem:[#allocation3 + $0x20] sm:$0xff] %vm388, %v1127
      %1171 = vst.msk [vmem:[#allocation3 + $0x28] sm:$0xff] %vm388, %v1129
      %1172 = vst.msk [vmem:[#allocation3 + $0x30] sm:$0xff] %vm388, %v1131
      %1173 = vst.msk [vmem:[#allocation3 + $0x38] sm:$0xff] %vm388, %v1133
      %1174 = vst.msk [vmem:[#allocation3 + $0x40] sm:$0xff] %vm388, %v1135
      %1175 = vst.msk [vmem:[#allocation3 + $0x48] sm:$0xff] %vm388, %v1137
      %1176 = vst.msk [vmem:[#allocation3 + $0x50] sm:$0xff] %vm388, %v1139
      %1177 = vst.msk [vmem:[#allocation3 + $0x58] sm:$0xff] %vm388, %v1141
      %1178 = vst.msk [vmem:[#allocation3 + $0x60] sm:$0xff] %vm388, %v1143
      %1179 = vst.msk [vmem:[#allocation3 + $0x68] sm:$0xff] %vm388, %v1145
      %1180 = vst.msk [vmem:[#allocation3 + $0x70] sm:$0xff] %vm388, %v1147
      %1181 = vst.msk [vmem:[#allocation3 + $0x78] sm:$0xff] %vm388, %v1149
      %1182 = vst.msk [vmem:[#allocation2] sm:$0xff] %vm388, %v1086
      %1183 = vst.msk [vmem:[#allocation2 + $0x8] sm:$0xff] %vm388, %v1087
      %1184 = vst.msk [vmem:[#allocation2 + $0x10] sm:$0xff] %vm388, %v1088
      %1185 = vst.msk [vmem:[#allocation2 + $0x18] sm:$0xff] %vm388, %v1089
      %1186 = vst.msk [vmem:[#allocation2 + $0x20] sm:$0xff] %vm388, %v1090
      %1187 = vst.msk [vmem:[#allocation2 + $0x28] sm:$0xff] %vm388, %v1091
      %1188 = vst.msk [vmem:[#allocation2 + $0x30] sm:$0xff] %vm388, %v1092
      %1189 = vst.msk [vmem:[#allocation2 + $0x38] sm:$0xff] %vm388, %v1093
      %1190 = vst.msk [vmem:[#allocation2 + $0x40] sm:$0xff] %vm388, %v1094
      %1191 = vst.msk [vmem:[#allocation2 + $0x48] sm:$0xff] %vm388, %v1095
      %1192 = vst.msk [vmem:[#allocation2 + $0x50] sm:$0xff] %vm388, %v1096
      %1193 = vst.msk [vmem:[#allocation2 + $0x58] sm:$0xff] %vm388, %v1097
      %1194 = vst.msk [vmem:[#allocation2 + $0x60] sm:$0xff] %vm388, %v1098
      %1195 = vst.msk [vmem:[#allocation2 + $0x68] sm:$0xff] %vm388, %v1099
      %1196 = vst.msk [vmem:[#allocation2 + $0x70] sm:$0xff] %vm388, %v1100
      %1197 = vst.msk [vmem:[#allocation2 + $0x78] sm:$0xff] %vm388, %v1101
      %p1198 = scmp.eq.s32.totalorder %s20, 27
      // Predicated region
      $region41: #{rnn_net_forward.3} parent=35 // pred_check
        %p1199 = pneg %p1198
      $region42: #{rnn_net_forward.3} parent=35 // pred_check_branch
        %1201 = sbr.rel (%p1199) target = $region44
      $region43: #{rnn_net_forward.3} parent=35 // pred_region
        %v1202 = vld [vmem:[%s2] sm:$0xff]
        %v1203 = vld [vmem:[%s2 + $0x8] sm:$0xff]
        %v1204 = vld [vmem:[%s2 + $0x10] sm:$0xff]
        %v1205 = vld [vmem:[%s2 + $0x18] sm:$0xff]
        %v1206 = vld [vmem:[%s2 + $0x20] sm:$0xff]
        %v1207 = vld [vmem:[%s2 + $0x28] sm:$0xff]
        %v1208 = vld [vmem:[%s2 + $0x30] sm:$0xff]
        %v1209 = vld [vmem:[%s2 + $0x38] sm:$0xff]
        %v1210 = vld [vmem:[%s3] sm:$0x1]
        %v1212 = vlaneseq
        %v1213 = vshrl.u32 %v1212, 7
        %v1214 = vsub.s32 0, %v1213
        %v1215 = vrot.slane %v1210, %v1214
        %v1218 = vsel %vm388, %v1086, 0
        %v1221 = vsel %vm388, %v1087, 0
        %v1224 = vsel %vm388, %v1088, 0
        %v1227 = vsel %vm388, %v1089, 0
        %v1230 = vsel %vm388, %v1090, 0
        %v1233 = vsel %vm388, %v1091, 0
        %v1236 = vsel %vm388, %v1092, 0
        %v1239 = vsel %vm388, %v1093, 0
        %v1242 = vsel %vm388, %v1094, 0
        %v1245 = vsel %vm388, %v1095, 0
        %v1248 = vsel %vm388, %v1096, 0
        %v1251 = vsel %vm388, %v1097, 0
        %v1254 = vsel %vm388, %v1098, 0
        %v1257 = vsel %vm388, %v1099, 0
        %v1260 = vsel %vm388, %v1100, 0
        %v1263 = vsel %vm388, %v1101, 0
        %1265 = vmatprep.subr.mxu0 0.0
        %1266 = vmatpush1.msra.mxu0 %v1202
        %1267 = vmatprep.subr.mxu0 0.0
        %1268 = vmatpush1.msra.mxu0 %v1203
        %1269 = vmatprep.subr.mxu0 0.0
        %1270 = vmatpush1.msra.mxu0 %v1204
        %1271 = vmatprep.subr.mxu0 0.0
        %1272 = vmatpush1.msra.mxu0 %v1205
        %1273 = vmatprep.subr.mxu0 0.0
        %1274 = vmatpush1.msra.mxu0 %v1206
        %1275 = vmatprep.subr.mxu0 0.0
        %1276 = vmatpush1.msra.mxu0 %v1207
        %1277 = vmatprep.subr.mxu0 0.0
        %1278 = vmatpush1.msra.mxu0 %v1208
        %1279 = vmatprep.subr.mxu0 0.0
        %1280 = vmatpush1.msra.mxu0 %v1209
        %1281 = vmatprep.subr.mxu0 0.0
        %1282 = vmatpush1.msra.mxu0 0.0
        %1283 = vmatprep.subr.mxu0 0.0
        %1284 = vmatpush1.msra.mxu0 0.0
        %1285 = vmatprep.subr.mxu0 0.0
        %1286 = vmatpush1.msra.mxu0 0.0
        %1287 = vmatprep.subr.mxu0 0.0
        %1288 = vmatpush1.msra.mxu0 0.0
        %1289 = vmatprep.subr.mxu0 0.0
        %1290 = vmatpush1.msra.mxu0 0.0
        %1291 = vmatprep.subr.mxu0 0.0
        %1292 = vmatpush1.msra.mxu0 0.0
        %1293 = vmatprep.subr.mxu0 0.0
        %1294 = vmatpush1.msra.mxu0 0.0
        %1295 = vmatprep.subr.mxu0 0.0
        %1296 = vmatpush1.msra.mxu0 0.0
        %1297 = vmatprep.subr.mxu0 0.0
        %1298 = vmatpush1.msra.mxu0 0.0
        %1299 = vmatprep.subr.mxu0 0.0
        %1300 = vmatpush1.msra.mxu0 0.0
        %1301 = vmatprep.subr.mxu0 0.0
        %1302 = vmatpush1.msra.mxu0 0.0
        %1303 = vmatprep.subr.mxu0 0.0
        %1304 = vmatpush1.msra.mxu0 0.0
        %1305 = vmatprep.subr.mxu0 0.0
        %1306 = vmatpush1.msra.mxu0 0.0
        %1307 = vmatprep.subr.mxu0 0.0
        %1308 = vmatpush1.msra.mxu0 0.0
        %1309 = vmatprep.subr.mxu0 0.0
        %1310 = vmatpush1.msra.mxu0 0.0
        %1311 = vmatprep.subr.mxu0 0.0
        %1312 = vmatpush1.msra.mxu0 0.0
        %1313 = vmatprep.subr.mxu0 0.0
        %1314 = vmatpush1.msra.mxu0 0.0
        %1315 = vmatprep.subr.mxu0 0.0
        %1316 = vmatpush1.msra.mxu0 0.0
        %1317 = vmatprep.subr.mxu0 0.0
        %1318 = vmatpush1.msra.mxu0 0.0
        %1319 = vmatprep.subr.mxu0 0.0
        %1320 = vmatpush1.msra.mxu0 0.0
        %1321 = vmatprep.subr.mxu0 0.0
        %1322 = vmatpush1.msra.mxu0 0.0
        %1323 = vmatprep.subr.mxu0 0.0
        %1324 = vmatpush1.msra.mxu0 0.0
        %1325 = vmatprep.subr.mxu0 0.0
        %1326 = vmatpush1.msra.mxu0 0.0
        %1327 = vmatprep.subr.mxu0 0.0
        %1328 = vmatpush1.msra.mxu0 0.0
        %1329 = vmatprep.mubr.f32.mxu0 0.0
        %1330 = vmatmul.mubr.f32.gmra.mrb[0].mxu0 %v1218
        %v1331 = vpop.f32.mrb[0].mxu0
        %v1332 = vadd.f32 %v1215, %v1331
        %v1333 = vpop.f32.mrb[0].mxu0
        %1334 = vmatprep.mubr.f32.mxu0 0.0
        %1335 = vmatmul.mubr.f32.gmra.mrb[0].mxu0 %v1221
        %v1336 = vpop.f32.mrb[0].mxu0
        %v1337 = vadd.f32 %v1215, %v1336
        %v1338 = vpop.f32.mrb[0].mxu0
        %1339 = vmatprep.mubr.f32.mxu0 0.0
        %1340 = vmatmul.mubr.f32.gmra.mrb[0].mxu0 %v1224
        %v1341 = vpop.f32.mrb[0].mxu0
        %v1342 = vadd.f32 %v1215, %v1341
        %v1343 = vpop.f32.mrb[0].mxu0
        %1344 = vmatprep.mubr.f32.mxu0 0.0
        %1345 = vmatmul.mubr.f32.gmra.mrb[0].mxu0 %v1227
        %v1346 = vpop.f32.mrb[0].mxu0
        %v1347 = vadd.f32 %v1215, %v1346
        %v1348 = vpop.f32.mrb[0].mxu0
        %1349 = vmatprep.mubr.f32.mxu0 0.0
        %1350 = vmatmul.mubr.f32.gmra.mrb[0].mxu0 %v1230
        %v1351 = vpop.f32.mrb[0].mxu0
        %v1352 = vadd.f32 %v1215, %v1351
        %v1353 = vpop.f32.mrb[0].mxu0
        %1354 = vmatprep.mubr.f32.mxu0 0.0
        %1355 = vmatmul.mubr.f32.gmra.mrb[0].mxu0 %v1233
        %v1356 = vpop.f32.mrb[0].mxu0
        %v1357 = vadd.f32 %v1215, %v1356
        %v1358 = vpop.f32.mrb[0].mxu0
        %1359 = vmatprep.mubr.f32.mxu0 0.0
        %1360 = vmatmul.mubr.f32.gmra.mrb[0].mxu0 %v1236
        %v1361 = vpop.f32.mrb[0].mxu0
        %v1362 = vadd.f32 %v1215, %v1361
        %v1363 = vpop.f32.mrb[0].mxu0
        %1364 = vmatprep.mubr.f32.mxu0 0.0
        %1365 = vmatmul.mubr.f32.gmra.mrb[0].mxu0 %v1239
        %v1366 = vpop.f32.mrb[0].mxu0
        %v1367 = vadd.f32 %v1215, %v1366
        %v1368 = vpop.f32.mrb[0].mxu0
        %1369 = vmatprep.mubr.f32.mxu0 0.0
        %1370 = vmatmul.mubr.f32.gmra.mrb[0].mxu0 %v1242
        %v1371 = vpop.f32.mrb[0].mxu0
        %v1372 = vadd.f32 %v1215, %v1371
        %v1373 = vpop.f32.mrb[0].mxu0
        %1374 = vmatprep.mubr.f32.mxu0 0.0
        %1375 = vmatmul.mubr.f32.gmra.mrb[0].mxu0 %v1245
        %v1376 = vpop.f32.mrb[0].mxu0
        %v1377 = vadd.f32 %v1215, %v1376
        %v1378 = vpop.f32.mrb[0].mxu0
        %1379 = vmatprep.mubr.f32.mxu0 0.0
        %1380 = vmatmul.mubr.f32.gmra.mrb[0].mxu0 %v1248
        %v1381 = vpop.f32.mrb[0].mxu0
        %v1382 = vadd.f32 %v1215, %v1381
        %v1383 = vpop.f32.mrb[0].mxu0
        %1384 = vmatprep.mubr.f32.mxu0 0.0
        %1385 = vmatmul.mubr.f32.gmra.mrb[0].mxu0 %v1251
        %v1386 = vpop.f32.mrb[0].mxu0
        %v1387 = vadd.f32 %v1215, %v1386
        %v1388 = vpop.f32.mrb[0].mxu0
        %1389 = vmatprep.mubr.f32.mxu0 0.0
        %1390 = vmatmul.mubr.f32.gmra.mrb[0].mxu0 %v1254
        %v1391 = vpop.f32.mrb[0].mxu0
        %v1392 = vadd.f32 %v1215, %v1391
        %v1393 = vpop.f32.mrb[0].mxu0
        %1394 = vmatprep.mubr.f32.mxu0 0.0
        %1395 = vmatmul.mubr.f32.gmra.mrb[0].mxu0 %v1257
        %v1396 = vpop.f32.mrb[0].mxu0
        %v1397 = vadd.f32 %v1215, %v1396
        %v1398 = vpop.f32.mrb[0].mxu0
        %1399 = vmatprep.mubr.f32.mxu0 0.0
        %1400 = vmatmul.mubr.f32.gmra.mrb[0].mxu0 %v1260
        %v1401 = vpop.f32.mrb[0].mxu0
        %v1402 = vadd.f32 %v1215, %v1401
        %v1403 = vpop.f32.mrb[0].mxu0
        %1404 = vmatprep.mubr.f32.mxu0 0.0
        %1405 = vmatmul.mubr.f32.gmra.mrb[0].mxu0 %v1263
        %v1406 = vpop.f32.mrb[0].mxu0
        %v1407 = vadd.f32 %v1215, %v1406
        %v1408 = vpop.f32.mrb[0].mxu0
        %1409 = vdwg.mxu0
        %vm1410 = vcmask 80896
        %1411 = vst.msk [vmem:[%s228] sm:$0xff] %vm1410, %v1332
        %1412 = vst.msk [vmem:[%s228 + $0x8] sm:$0xff] %vm1410, %v1337
        %1413 = vst.msk [vmem:[%s228 + $0x10] sm:$0xff] %vm1410, %v1342
        %1414 = vst.msk [vmem:[%s228 + $0x18] sm:$0xff] %vm1410, %v1347
        %1415 = vst.msk [vmem:[%s228 + $0x20] sm:$0xff] %vm1410, %v1352
        %1416 = vst.msk [vmem:[%s228 + $0x28] sm:$0xff] %vm1410, %v1357
        %1417 = vst.msk [vmem:[%s228 + $0x30] sm:$0xff] %vm1410, %v1362
        %1418 = vst.msk [vmem:[%s228 + $0x38] sm:$0xff] %vm1410, %v1367
        %1419 = vst.msk [vmem:[%s228 + $0x40] sm:$0xff] %vm1410, %v1372
        %1420 = vst.msk [vmem:[%s228 + $0x48] sm:$0xff] %vm1410, %v1377
        %1421 = vst.msk [vmem:[%s228 + $0x50] sm:$0xff] %vm1410, %v1382
        %1422 = vst.msk [vmem:[%s228 + $0x58] sm:$0xff] %vm1410, %v1387
        %1423 = vst.msk [vmem:[%s228 + $0x60] sm:$0xff] %vm1410, %v1392
        %1424 = vst.msk [vmem:[%s228 + $0x68] sm:$0xff] %vm1410, %v1397
        %1425 = vst.msk [vmem:[%s228 + $0x70] sm:$0xff] %vm1410, %v1402
        %1426 = vst.msk [vmem:[%s228 + $0x78] sm:$0xff] %vm1410, %v1407
      $region44: #{rnn_net_forward.3} parent=35 // pred_fallthru
        _
      %s1427 = smul.u32 16, %s19
      %p1428 = scmp.lt.s32.totalorder %s1427, 31
      %s1429 = scalar_select %p1428, %s1427, 31
      %s1430 = smul.addr %s1429, 8
      %s1431 = scalar_lea.vmem %s4, %s1430
      // Predicated region
      $region45: #{rnn_net_forward.3} parent=35 // pred_check
        %p1432 = pneg %p136
      $region46: #{rnn_net_forward.3} parent=35 // pred_check_branch
        %1434 = sbr.rel (%p1432) target = $region48
      $region47: #{rnn_net_forward.3} parent=35 // pred_region
        %s1435 = smul.u32 16, %s19
      $region48: #{rnn_net_forward.3} parent=35 // pred_fallthru
        _
    $region36: #{rnn_net_forward.3} parent=5 // pred_fallthru
      _
    %p1436 = scmp.le.s32.totalorder 2, %s10
    // Predicated region
    $region49: #{rnn_net_forward.3} parent=5 // pred_check
      %p1437 = pneg %p1436
    $region50: #{rnn_net_forward.3} parent=5 // pred_check_branch
      %1439 = sbr.rel (%p1437) target = $region52
    $region51: #{rnn_net_forward.3} parent=5 // pred_region
      %s1440 = ssub.s32 %s10, 2
      // Predicated region
      $region53: #{rnn_net_forward.3} parent=51 // pred_check
        %p1441 = pneg %p142
      $region54: #{rnn_net_forward.3} parent=51 // pred_check_branch
        %1443 = sbr.rel (%p1441) target = $region56
      $region55: #{rnn_net_forward.3} parent=51 // pred_region
        %s1444 = smul.u32 16, %s21
        %p1445 = scmp.lt.s32.totalorder %s1444, 31
        %s1446 = scalar_select %p1445, %s1444, 31
        %s1447 = smul.addr %s1446, 8
        %s1448 = scalar_lea.vmem %s4, %s1447
      $region56: #{rnn_net_forward.3} parent=51 // pred_fallthru
        _
    $region52: #{rnn_net_forward.3} parent=5 // pred_fallthru
      _
  $region6: #{rnn_net_forward.3} parent=0 // loop_footer
    %s14 = sadd.s32 1, %s10
  $region7: #{rnn_net_forward.3} parent=0 // loop_footer_branch
    %9 = sbr.rel target = $region3
  $region8: #{rnn_net_forward.3} parent=0 // loop_exit
    _

</llo_original>
